<compile_context>
chip_gen: v6e
topology: v6e:2x2x1
jax: 0.10.0
libtpu: 0.0.40
codegen_flags: <defaults>
</compile_context>

<pallas_src>
import functools

import jax
import jax.numpy as jnp
from jax import lax
from jax.experimental import pallas as pl
from jax.experimental.pallas import tpu as pltpu


def _sepconv_kernel(xc_ref, xt_ref, xb_ref, wdw_ref, wpw_ref, b_ref,
                    o_ref, xext_ref):
    """Processes one (batch, row-tile) grid point.

    xc_ref  : (1, TH, W, Cin)   centre rows of the tile (NHWC)
    xt_ref  : (1, 1,  W, Cin)   row just above the tile (clamped at the edge)
    xb_ref  : (1, 1,  W, Cin)   row just below the tile (clamped at the edge)
    wdw_ref : (3, 3, Cin)       depthwise weights
    wpw_ref : (Cin, Cout)       pointwise weights
    b_ref   : (1, Cout)         pointwise bias
    o_ref   : (1, TH, W, Cout)  output tile
    xext_ref: (TH+2, W+2, Cin)  VMEM scratch holding the zero-padded tile
    """
    TH = o_ref.shape[1]
    W = o_ref.shape[2]
    Cin = xc_ref.shape[3]
    dt = xext_ref.dtype

    t = pl.program_id(1)
    nt = pl.num_programs(1)

    # ---- assemble the padded tile in VMEM (no HBM padding pass) -----------
    # left / right zero columns
    xext_ref[:, 0:1, :] = jnp.zeros((TH + 2, 1, Cin), dt)
    xext_ref[:, W + 1:W + 2, :] = jnp.zeros((TH + 2, 1, Cin), dt)
    # centre rows
    xext_ref[1:TH + 1, 1:W + 1, :] = xc_ref[0]

    # top halo row (zero at the top edge of the image)
    xext_ref[0:1, 1:W + 1, :] = xt_ref[0]

    @pl.when(t == 0)
    def _():
        xext_ref[0:1, 1:W + 1, :] = jnp.zeros((1, W, Cin), dt)

    # bottom halo row (zero at the bottom edge of the image)
    xext_ref[TH + 1:TH + 2, 1:W + 1, :] = xb_ref[0]

    @pl.when(t == nt - 1)
    def _():
        xext_ref[TH + 1:TH + 2, 1:W + 1, :] = jnp.zeros((1, W, Cin), dt)

    # ---- depthwise 3x3: 9 shifted windows, per-channel scale (VPU) --------
    x = xext_ref[...].astype(jnp.float32)        # (TH+2, W+2, Cin)
    wdw = wdw_ref[...].astype(jnp.float32)       # (3, 3, Cin)

    acc = jnp.zeros((TH, W, Cin), jnp.float32)
    for kh in range(3):
        for kw in range(3):
            acc = acc + x[kh:kh + TH, kw:kw + W, :] * wdw[kh, kw, :]

    # ---- pointwise 1x1: (TH*W, Cin) @ (Cin, Cout) on the MXU + bias --------
    lhs = acc.reshape(TH * W, Cin).astype(dt)    # keep bf16 operands bf16
    rhs = wpw_ref[...].astype(dt)
    y = jnp.dot(lhs, rhs, preferred_element_type=jnp.float32)
    y = y + b_ref[0].astype(jnp.float32)
    o_ref[0] = y.reshape(TH, W, -1).astype(o_ref.dtype)


def _vmem_capacity_bytes() -> int:
    try:
        cap = int(getattr(pltpu.get_tpu_info(), "vmem_capacity_bytes", 0))
        if cap > 0:
            return cap
    except Exception:
        pass
    return 64 * 1024 * 1024          # conservative default (v7x per-core VMEM)


def _tile_vmem_bytes(tile_h, W, Cin, Cout, itemsize):
    """Rough VMEM working set: double-buffered blocks + scratch + f32 temps."""
    blk_in = 2 * tile_h * W * Cin * itemsize
    blk_halo = 2 * 2 * W * Cin * itemsize
    blk_out = 2 * tile_h * W * Cout * itemsize
    weights = 2 * (9 * Cin + Cin * Cout + Cout) * itemsize
    scratch = (tile_h + 2) * (W + 2) * Cin * itemsize
    temps = 4 * ((tile_h + 2) * (W + 2) * Cin
                 + tile_h * W * Cin + tile_h * W * Cout)
    return blk_in + blk_halo + blk_out + weights + scratch + temps


def _pick_tile_h(H, W, Cin, Cout, itemsize, budget):
    best = 1
    for th in range(1, H + 1):
        if H % th == 0 and _tile_vmem_bytes(th, W, Cin, Cout, itemsize) <= budget:
            best = th
    return best


@functools.partial(jax.jit, static_argnames=("tile_h",))
def separable_conv(x_nchw, w_dw, w_pw, b_pw, *, tile_h=None):
    """x_nchw: (B, Cin, H, W); w_dw: (3,3,Cin); w_pw: (Cin,Cout); b_pw: (Cout,)
    Returns (B, Cout, H, W) — same semantics as the PyTorch module."""
    B, Cin, H, W = x_nchw.shape
    Cout = w_pw.shape[1]
    itemsize = x_nchw.dtype.itemsize

    vmem_cap = _vmem_capacity_bytes()
    if tile_h is None:
        tile_h = _pick_tile_h(H, W, Cin, Cout, itemsize, budget=vmem_cap // 4)
    if H % tile_h != 0:
        raise ValueError(f"tile_h={tile_h} must divide H={H}")
    n_th = H // tile_h

    # NCHW -> NHWC (single XLA copy; the halo/pad is built inside the kernel).
    x_nhwc = jnp.transpose(x_nchw, (0, 2, 3, 1))
    bias2d = b_pw.reshape(1, Cout)

    vmem_limit = int(min(int(0.9 * vmem_cap),
                         max(2 * _tile_vmem_bytes(tile_h, W, Cin, Cout, itemsize),
                             16 * 1024 * 1024)))

    flops = 2 * B * H * W * Cin * (9 + Cout)
    bytes_accessed = (B * H * W * (Cin + Cout)) * itemsize \
        + (9 * Cin + Cin * Cout + Cout) * w_pw.dtype.itemsize

    out_nhwc = pl.pallas_call(
        _sepconv_kernel,
        out_shape=jax.ShapeDtypeStruct((B, H, W, Cout), x_nchw.dtype),
        grid_spec=pltpu.PrefetchScalarGridSpec(
            num_scalar_prefetch=0,
            grid=(B, n_th),
            in_specs=[
                # centre rows of the tile
                pl.BlockSpec((1, tile_h, W, Cin), lambda b, t: (b, t, 0, 0)),
                # 1-row top halo (clamped at the edge; masked to zero in-kernel)
                pl.BlockSpec((1, 1, W, Cin),
                             lambda b, t: (b, jnp.maximum(t * tile_h - 1, 0), 0, 0)),
                # 1-row bottom halo
                pl.BlockSpec((1, 1, W, Cin),
                             lambda b, t: (b, jnp.minimum((t + 1) * tile_h, H - 1), 0, 0)),
                pl.BlockSpec((3, 3, Cin), lambda b, t: (0, 0, 0)),
                pl.BlockSpec((Cin, Cout), lambda b, t: (0, 0)),
                pl.BlockSpec((1, Cout), lambda b, t: (0, 0)),
            ],
            out_specs=pl.BlockSpec((1, tile_h, W, Cout), lambda b, t: (b, t, 0, 0)),
            scratch_shapes=[pltpu.VMEM((tile_h + 2, W + 2, Cin), x_nchw.dtype)],
        ),
        compiler_params=pltpu.CompilerParams(
            dimension_semantics=("parallel", "parallel"),
            vmem_limit_bytes=vmem_limit),
        cost_estimate=pl.CostEstimate(flops=flops, transcendentals=0,
                                      bytes_accessed=bytes_accessed),
    )(x_nhwc, x_nhwc, x_nhwc, w_dw, w_pw, bias2d)

    # NHWC -> NCHW to match the PyTorch output convention.
    return jnp.transpose(out_nhwc, (0, 3, 1, 2))


def _reference(x_nchw, w_dw, w_pw, b_pw):
    """Pure-JAX reference (lax conv) reproducing the PyTorch forward."""
    Cin = x_nchw.shape[1]
    # depthwise: torch weight (Cin, 1, 3, 3) == our w_dw (3,3,Cin) transposed.
    w_dw_oihw = jnp.transpose(w_dw, (2, 0, 1))[:, None, :, :]        # (Cin,1,3,3)
    y = lax.conv_general_dilated(
        x_nchw, w_dw_oihw, window_strides=(1, 1), padding=((1, 1), (1, 1)),
        feature_group_count=Cin,
        dimension_numbers=("NCHW", "OIHW", "NCHW"),
        precision=lax.Precision.HIGHEST)
    # pointwise: torch weight (Cout, Cin, 1, 1) == w_pw.T reshaped.
    w_pw_oihw = jnp.transpose(w_pw, (1, 0))[:, :, None, None]        # (Cout,Cin,1,1)
    y = lax.conv_general_dilated(
        y, w_pw_oihw, window_strides=(1, 1), padding=((0, 0), (0, 0)),
        dimension_numbers=("NCHW", "OIHW", "NCHW"),
        precision=lax.Precision.HIGHEST)
    return y + b_pw[None, :, None, None]


if __name__ == "__main__":
    B, Cin, Cout, H, W = 2, 4, 8, 16, 16

    key = jax.random.PRNGKey(0)
    kx, kdw, kpw, kb = jax.random.split(key, 4)

    x = jax.random.normal(kx, (B, Cin, H, W), jnp.float32)
    # kaiming-style scales (conv_dw fan_in = 9, conv_sp fan_in = Cin);
    # non-zero bias to exercise the bias path.
    w_dw = jax.random.normal(kdw, (3, 3, Cin), jnp.float32) * jnp.sqrt(2.0 / 9.0)
    w_pw = jax.random.normal(kpw, (Cin, Cout), jnp.float32) * jnp.sqrt(2.0 / Cin)
    b_pw = jax.random.normal(kb, (Cout,), jnp.float32) * 0.1

    ref = _reference(x, w_dw, w_pw, b_pw)

    # Explicit row tiling (2 tiles per image -> exercises the halo masking path).
    out_tiled = jax.block_until_ready(
        separable_conv(x, w_dw, w_pw, b_pw, tile_h=8))
    # Auto-selected tile size (derived from the VMEM budget).
    out_auto = jax.block_until_ready(separable_conv(x, w_dw, w_pw, b_pw))

    assert out_tiled.shape == (B, Cout, H, W), out_tiled.shape
    err_t = float(jnp.max(jnp.abs(out_tiled - ref)))
    err_a = float(jnp.max(jnp.abs(out_auto - ref)))
    assert jnp.allclose(out_tiled, ref, atol=1e-4, rtol=1e-4), err_t
    assert jnp.allclose(out_auto, ref, atol=1e-4, rtol=1e-4), err_a

    print("KERNEL_OK")
</pallas_src>

<mosaic_0001>
module attributes {stable_mosaic.version = 11 : i64} {
  func.func @_sepconv_kernel(%arg0: i32, %arg1: i32, %arg2: memref<1x8x16x4xf32, #tpu.memory_space<vmem>>, %arg3: memref<1x1x16x4xf32, #tpu.memory_space<vmem>>, %arg4: memref<1x1x16x4xf32, #tpu.memory_space<vmem>>, %arg5: memref<3x3x4xf32, #tpu.memory_space<vmem>>, %arg6: memref<4x8xf32, #tpu.memory_space<vmem>>, %arg7: memref<1x8xf32, #tpu.memory_space<vmem>>, %arg8: memref<1x8x16x8xf32, #tpu.memory_space<vmem>>, %arg9: memref<10x18x4xf32, #tpu.memory_space<vmem>>) attributes {dimension_semantics = [#tpu.dimension_semantics<parallel>, #tpu.dimension_semantics<parallel>], iteration_bounds = array<i64: 2, 2>, scalar_prefetch = 0 : i64, scratch_operands = 1 : i64, tpu.core_type = #tpu.core_type<tc>, window_params = [{transform_indices = @transform_0, window_bounds = array<i64: 1, 8, 16, 4>}, {transform_indices = @transform_1, window_bounds = array<i64: 1, 1, 16, 4>}, {transform_indices = @transform_2, window_bounds = array<i64: 1, 1, 16, 4>}, {pipeline_mode = #tpu.pipeline_mode<synchronous>, transform_indices = @transform_3, window_bounds = array<i64: 3, 3, 4>}, {pipeline_mode = #tpu.pipeline_mode<synchronous>, transform_indices = @transform_4, window_bounds = array<i64: 4, 8>}, {pipeline_mode = #tpu.pipeline_mode<synchronous>, transform_indices = @transform_5, window_bounds = array<i64: 1, 8>}, {transform_indices = @transform_6, window_bounds = array<i64: 1, 8, 16, 8>}]} {
    %cst = arith.constant 0.000000e+00 : f32
    %0 = vector.broadcast %cst : f32 to vector<10x1x4xf32>
    %c0 = arith.constant 0 : index
    %c0_0 = arith.constant 0 : index
    %c0_1 = arith.constant 0 : index
    %1 = vector.load %arg9[%c0, %c0_0, %c0_1] : memref<10x18x4xf32, #tpu.memory_space<vmem>>, vector<10x1x4xf32>
    tpu.vector_store %arg9[%c0, %c0_0, %c0_1], %0 {strides = array<i32>} : memref<10x18x4xf32, #tpu.memory_space<vmem>>, vector<10x1x4xf32>,
    %cst_2 = arith.constant 0.000000e+00 : f32
    %2 = vector.broadcast %cst_2 : f32 to vector<10x1x4xf32>
    %c0_3 = arith.constant 0 : index
    %c17 = arith.constant 17 : index
    %c0_4 = arith.constant 0 : index
    %3 = vector.load %arg9[%c0_3, %c17, %c0_4] : memref<10x18x4xf32, #tpu.memory_space<vmem>>, vector<10x1x4xf32>
    tpu.vector_store %arg9[%c0_3, %c17, %c0_4], %2 {strides = array<i32>} : memref<10x18x4xf32, #tpu.memory_space<vmem>>, vector<10x1x4xf32>,
    %c0_5 = arith.constant 0 : index
    %c0_6 = arith.constant 0 : index
    %c0_7 = arith.constant 0 : index
    %c0_8 = arith.constant 0 : index
    %4 = vector.load %arg2[%c0_5, %c0_6, %c0_7, %c0_8] : memref<1x8x16x4xf32, #tpu.memory_space<vmem>>, vector<1x8x16x4xf32>
    %5 = vector.shape_cast %4 : vector<1x8x16x4xf32> to vector<8x16x4xf32>
    %c1 = arith.constant 1 : index
    %c1_9 = arith.constant 1 : index
    %c0_10 = arith.constant 0 : index
    %6 = vector.load %arg9[%c1, %c1_9, %c0_10] : memref<10x18x4xf32, #tpu.memory_space<vmem>>, vector<8x16x4xf32>
    tpu.vector_store %arg9[%c1, %c1_9, %c0_10], %5 {strides = array<i32>} : memref<10x18x4xf32, #tpu.memory_space<vmem>>, vector<8x16x4xf32>,
    %c0_11 = arith.constant 0 : index
    %c0_12 = arith.constant 0 : index
    %c0_13 = arith.constant 0 : index
    %c0_14 = arith.constant 0 : index
    %7 = vector.load %arg3[%c0_11, %c0_12, %c0_13, %c0_14] : memref<1x1x16x4xf32, #tpu.memory_space<vmem>>, vector<1x1x16x4xf32>
    %8 = vector.shape_cast %7 : vector<1x1x16x4xf32> to vector<1x16x4xf32>
    %c0_15 = arith.constant 0 : index
    %c1_16 = arith.constant 1 : index
    %c0_17 = arith.constant 0 : index
    %9 = vector.load %arg9[%c0_15, %c1_16, %c0_17] : memref<10x18x4xf32, #tpu.memory_space<vmem>>, vector<1x16x4xf32>
    tpu.vector_store %arg9[%c0_15, %c1_16, %c0_17], %8 {strides = array<i32>} : memref<10x18x4xf32, #tpu.memory_space<vmem>>, vector<1x16x4xf32>,
    %c0_i32 = arith.constant 0 : i32
    %10 = arith.cmpi eq, %arg1, %c0_i32 : i32
    %11 = arith.extui %10 : i1 to i32
    %c0_i32_18 = arith.constant 0 : i32
    %12 = arith.cmpi ne, %11, %c0_i32_18 : i32
    scf.if %12 {
      %cst_42 = arith.constant 0.000000e+00 : f32
      %97 = vector.broadcast %cst_42 : f32 to vector<1x16x4xf32>
      %c0_43 = arith.constant 0 : index
      %c1_44 = arith.constant 1 : index
      %c0_45 = arith.constant 0 : index
      %98 = vector.load %arg9[%c0_43, %c1_44, %c0_45] : memref<10x18x4xf32, #tpu.memory_space<vmem>>, vector<1x16x4xf32>
      tpu.vector_store %arg9[%c0_43, %c1_44, %c0_45], %97 {strides = array<i32>} : memref<10x18x4xf32, #tpu.memory_space<vmem>>, vector<1x16x4xf32>,
    } else {
    }
    %c0_19 = arith.constant 0 : index
    %c0_20 = arith.constant 0 : index
    %c0_21 = arith.constant 0 : index
    %c0_22 = arith.constant 0 : index
    %13 = vector.load %arg4[%c0_19, %c0_20, %c0_21, %c0_22] : memref<1x1x16x4xf32, #tpu.memory_space<vmem>>, vector<1x1x16x4xf32>
    %14 = vector.shape_cast %13 : vector<1x1x16x4xf32> to vector<1x16x4xf32>
    %c9 = arith.constant 9 : index
    %c1_23 = arith.constant 1 : index
    %c0_24 = arith.constant 0 : index
    %15 = vector.load %arg9[%c9, %c1_23, %c0_24] : memref<10x18x4xf32, #tpu.memory_space<vmem>>, vector<1x16x4xf32>
    tpu.vector_store %arg9[%c9, %c1_23, %c0_24], %14 {strides = array<i32>} : memref<10x18x4xf32, #tpu.memory_space<vmem>>, vector<1x16x4xf32>,
    %c1_i32 = arith.constant 1 : i32
    %16 = arith.cmpi eq, %arg1, %c1_i32 : i32
    %17 = arith.extui %16 : i1 to i32
    %c0_i32_25 = arith.constant 0 : i32
    %18 = arith.cmpi ne, %17, %c0_i32_25 : i32
    scf.if %18 {
      %cst_42 = arith.constant 0.000000e+00 : f32
      %97 = vector.broadcast %cst_42 : f32 to vector<1x16x4xf32>
      %c9_43 = arith.constant 9 : index
      %c1_44 = arith.constant 1 : index
      %c0_45 = arith.constant 0 : index
      %98 = vector.load %arg9[%c9_43, %c1_44, %c0_45] : memref<10x18x4xf32, #tpu.memory_space<vmem>>, vector<1x16x4xf32>
      tpu.vector_store %arg9[%c9_43, %c1_44, %c0_45], %97 {strides = array<i32>} : memref<10x18x4xf32, #tpu.memory_space<vmem>>, vector<1x16x4xf32>,
    } else {
    }
    %c0_26 = arith.constant 0 : index
    %c0_27 = arith.constant 0 : index
    %c0_28 = arith.constant 0 : index
    %19 = vector.load %arg9[%c0_26, %c0_27, %c0_28] : memref<10x18x4xf32, #tpu.memory_space<vmem>>, vector<10x18x4xf32>
    %c0_29 = arith.constant 0 : index
    %c0_30 = arith.constant 0 : index
    %c0_31 = arith.constant 0 : index
    %20 = vector.load %arg5[%c0_29, %c0_30, %c0_31] : memref<3x3x4xf32, #tpu.memory_space<vmem>>, vector<3x3x4xf32>
    %cst_32 = arith.constant 0.000000e+00 : f32
    %21 = vector.broadcast %cst_32 : f32 to vector<8x16x4xf32>
    %22 = vector.extract_strided_slice %19 {offsets = [0, 0, 0], sizes = [8, 16, 4], strides = [1, 1, 1]} : vector<10x18x4xf32> to vector<8x16x4xf32>
    %23 = vector.extract_strided_slice %20 {offsets = [0, 0, 0], sizes = [1, 1, 4], strides = [1, 1, 1]} : vector<3x3x4xf32> to vector<1x1x4xf32>
    %24 = vector.shape_cast %23 : vector<1x1x4xf32> to vector<4xf32>
    %25 = vector.shape_cast %24 : vector<4xf32> to vector<1x1x4xf32>
    %26 = vector.broadcast %25 : vector<1x1x4xf32> to vector<8x16x4xf32>
    %27 = arith.mulf %22, %26 : vector<8x16x4xf32>
    %28 = arith.addf %21, %27 : vector<8x16x4xf32>
    %29 = vector.extract_strided_slice %19 {offsets = [0, 1, 0], sizes = [8, 16, 4], strides = [1, 1, 1]} : vector<10x18x4xf32> to vector<8x16x4xf32>
    %30 = vector.extract_strided_slice %20 {offsets = [0, 1, 0], sizes = [1, 1, 4], strides = [1, 1, 1]} : vector<3x3x4xf32> to vector<1x1x4xf32>
    %31 = vector.shape_cast %30 : vector<1x1x4xf32> to vector<4xf32>
    %32 = vector.shape_cast %31 : vector<4xf32> to vector<1x1x4xf32>
    %33 = vector.broadcast %32 : vector<1x1x4xf32> to vector<8x16x4xf32>
    %34 = arith.mulf %29, %33 : vector<8x16x4xf32>
    %35 = arith.addf %28, %34 : vector<8x16x4xf32>
    %36 = vector.extract_strided_slice %19 {offsets = [0, 2, 0], sizes = [8, 16, 4], strides = [1, 1, 1]} : vector<10x18x4xf32> to vector<8x16x4xf32>
    %37 = vector.extract_strided_slice %20 {offsets = [0, 2, 0], sizes = [1, 1, 4], strides = [1, 1, 1]} : vector<3x3x4xf32> to vector<1x1x4xf32>
    %38 = vector.shape_cast %37 : vector<1x1x4xf32> to vector<4xf32>
    %39 = vector.shape_cast %38 : vector<4xf32> to vector<1x1x4xf32>
    %40 = vector.broadcast %39 : vector<1x1x4xf32> to vector<8x16x4xf32>
    %41 = arith.mulf %36, %40 : vector<8x16x4xf32>
    %42 = arith.addf %35, %41 : vector<8x16x4xf32>
    %43 = vector.extract_strided_slice %19 {offsets = [1, 0, 0], sizes = [8, 16, 4], strides = [1, 1, 1]} : vector<10x18x4xf32> to vector<8x16x4xf32>
    %44 = vector.extract_strided_slice %20 {offsets = [1, 0, 0], sizes = [1, 1, 4], strides = [1, 1, 1]} : vector<3x3x4xf32> to vector<1x1x4xf32>
    %45 = vector.shape_cast %44 : vector<1x1x4xf32> to vector<4xf32>
    %46 = vector.shape_cast %45 : vector<4xf32> to vector<1x1x4xf32>
    %47 = vector.broadcast %46 : vector<1x1x4xf32> to vector<8x16x4xf32>
    %48 = arith.mulf %43, %47 : vector<8x16x4xf32>
    %49 = arith.addf %42, %48 : vector<8x16x4xf32>
    %50 = vector.extract_strided_slice %19 {offsets = [1, 1, 0], sizes = [8, 16, 4], strides = [1, 1, 1]} : vector<10x18x4xf32> to vector<8x16x4xf32>
    %51 = vector.extract_strided_slice %20 {offsets = [1, 1, 0], sizes = [1, 1, 4], strides = [1, 1, 1]} : vector<3x3x4xf32> to vector<1x1x4xf32>
    %52 = vector.shape_cast %51 : vector<1x1x4xf32> to vector<4xf32>
    %53 = vector.shape_cast %52 : vector<4xf32> to vector<1x1x4xf32>
    %54 = vector.broadcast %53 : vector<1x1x4xf32> to vector<8x16x4xf32>
    %55 = arith.mulf %50, %54 : vector<8x16x4xf32>
    %56 = arith.addf %49, %55 : vector<8x16x4xf32>
    %57 = vector.extract_strided_slice %19 {offsets = [1, 2, 0], sizes = [8, 16, 4], strides = [1, 1, 1]} : vector<10x18x4xf32> to vector<8x16x4xf32>
    %58 = vector.extract_strided_slice %20 {offsets = [1, 2, 0], sizes = [1, 1, 4], strides = [1, 1, 1]} : vector<3x3x4xf32> to vector<1x1x4xf32>
    %59 = vector.shape_cast %58 : vector<1x1x4xf32> to vector<4xf32>
    %60 = vector.shape_cast %59 : vector<4xf32> to vector<1x1x4xf32>
    %61 = vector.broadcast %60 : vector<1x1x4xf32> to vector<8x16x4xf32>
    %62 = arith.mulf %57, %61 : vector<8x16x4xf32>
    %63 = arith.addf %56, %62 : vector<8x16x4xf32>
    %64 = vector.extract_strided_slice %19 {offsets = [2, 0, 0], sizes = [8, 16, 4], strides = [1, 1, 1]} : vector<10x18x4xf32> to vector<8x16x4xf32>
    %65 = vector.extract_strided_slice %20 {offsets = [2, 0, 0], sizes = [1, 1, 4], strides = [1, 1, 1]} : vector<3x3x4xf32> to vector<1x1x4xf32>
    %66 = vector.shape_cast %65 : vector<1x1x4xf32> to vector<4xf32>
    %67 = vector.shape_cast %66 : vector<4xf32> to vector<1x1x4xf32>
    %68 = vector.broadcast %67 : vector<1x1x4xf32> to vector<8x16x4xf32>
    %69 = arith.mulf %64, %68 : vector<8x16x4xf32>
    %70 = arith.addf %63, %69 : vector<8x16x4xf32>
    %71 = vector.extract_strided_slice %19 {offsets = [2, 1, 0], sizes = [8, 16, 4], strides = [1, 1, 1]} : vector<10x18x4xf32> to vector<8x16x4xf32>
    %72 = vector.extract_strided_slice %20 {offsets = [2, 1, 0], sizes = [1, 1, 4], strides = [1, 1, 1]} : vector<3x3x4xf32> to vector<1x1x4xf32>
    %73 = vector.shape_cast %72 : vector<1x1x4xf32> to vector<4xf32>
    %74 = vector.shape_cast %73 : vector<4xf32> to vector<1x1x4xf32>
    %75 = vector.broadcast %74 : vector<1x1x4xf32> to vector<8x16x4xf32>
    %76 = arith.mulf %71, %75 : vector<8x16x4xf32>
    %77 = arith.addf %70, %76 : vector<8x16x4xf32>
    %78 = vector.extract_strided_slice %19 {offsets = [2, 2, 0], sizes = [8, 16, 4], strides = [1, 1, 1]} : vector<10x18x4xf32> to vector<8x16x4xf32>
    %79 = vector.extract_strided_slice %20 {offsets = [2, 2, 0], sizes = [1, 1, 4], strides = [1, 1, 1]} : vector<3x3x4xf32> to vector<1x1x4xf32>
    %80 = vector.shape_cast %79 : vector<1x1x4xf32> to vector<4xf32>
    %81 = vector.shape_cast %80 : vector<4xf32> to vector<1x1x4xf32>
    %82 = vector.broadcast %81 : vector<1x1x4xf32> to vector<8x16x4xf32>
    %83 = arith.mulf %78, %82 : vector<8x16x4xf32>
    %84 = arith.addf %77, %83 : vector<8x16x4xf32>
    %85 = vector.shape_cast %84 : vector<8x16x4xf32> to vector<128x4xf32>
    %c0_33 = arith.constant 0 : index
    %c0_34 = arith.constant 0 : index
    %86 = vector.load %arg6[%c0_33, %c0_34] : memref<4x8xf32, #tpu.memory_space<vmem>>, vector<4x8xf32>
    %cst_35 = arith.constant dense<0.000000e+00> : vector<128x8xf32>
    %87 = tpu.matmul %85, %86, %cst_35 {dimension_numbers = #tpu.dot_dimension_numbers<[1], [0], [0], [1], [0, 0, 1, 1], [], []>} : vector<128x4xf32>, vector<4x8xf32>, vector<128x8xf32> -> vector<128x8xf32>
    %c0_36 = arith.constant 0 : index
    %c0_37 = arith.constant 0 : index
    %88 = vector.load %arg7[%c0_36, %c0_37] : memref<1x8xf32, #tpu.memory_space<vmem>>, vector<1x8xf32>
    %89 = vector.shape_cast %88 : vector<1x8xf32> to vector<8xf32>
    %90 = vector.shape_cast %89 : vector<8xf32> to vector<1x8xf32>
    %91 = vector.broadcast %90 : vector<1x8xf32> to vector<128x8xf32>
    %92 = arith.addf %87, %91 : vector<128x8xf32>
    %93 = vector.shape_cast %92 : vector<128x8xf32> to vector<8x16x8xf32>
    %c0_38 = arith.constant 0 : index
    %c0_39 = arith.constant 0 : index
    %c0_40 = arith.constant 0 : index
    %c0_41 = arith.constant 0 : index
    %94 = vector.load %arg8[%c0_38, %c0_39, %c0_40, %c0_41] : memref<1x8x16x8xf32, #tpu.memory_space<vmem>>, vector<1x8x16x8xf32>
    %95 = vector.shape_cast %94 : vector<1x8x16x8xf32> to vector<8x16x8xf32>
    %96 = vector.shape_cast %93 : vector<8x16x8xf32> to vector<1x8x16x8xf32>
    tpu.vector_store %arg8[%c0_38, %c0_39, %c0_40, %c0_41], %96 {strides = array<i32>} : memref<1x8x16x8xf32, #tpu.memory_space<vmem>>, vector<1x8x16x8xf32>,
    return
  }
  func.func @transform_0(%arg0: i32, %arg1: i32) -> (i32, i32, i32, i32) {
    %c0_i32 = arith.constant 0 : i32
    %c0_i32_0 = arith.constant 0 : i32
    %c0_i32_1 = arith.constant 0 : i32
    return %arg0, %arg1, %c0_i32, %c0_i32_0 : i32, i32, i32, i32
  }
  func.func @transform_1(%arg0: i32, %arg1: i32) -> (i32, i32, i32, i32) {
    %c8_i32 = arith.constant 8 : i32
    %0 = arith.muli %arg1, %c8_i32 : i32
    %c1_i32 = arith.constant 1 : i32
    %1 = arith.subi %0, %c1_i32 : i32
    %c0_i32 = arith.constant 0 : i32
    %2 = arith.maxsi %1, %c0_i32 : i32
    %c0_i32_0 = arith.constant 0 : i32
    %c0_i32_1 = arith.constant 0 : i32
    %c0_i32_2 = arith.constant 0 : i32
    return %arg0, %2, %c0_i32_0, %c0_i32_1 : i32, i32, i32, i32
  }
  func.func @transform_2(%arg0: i32, %arg1: i32) -> (i32, i32, i32, i32) {
    %c1_i32 = arith.constant 1 : i32
    %0 = arith.addi %arg1, %c1_i32 : i32
    %c8_i32 = arith.constant 8 : i32
    %1 = arith.muli %0, %c8_i32 : i32
    %c15_i32 = arith.constant 15 : i32
    %2 = arith.minsi %1, %c15_i32 : i32
    %c0_i32 = arith.constant 0 : i32
    %c0_i32_0 = arith.constant 0 : i32
    %c0_i32_1 = arith.constant 0 : i32
    return %arg0, %2, %c0_i32, %c0_i32_0 : i32, i32, i32, i32
  }
  func.func @transform_3(%arg0: i32, %arg1: i32) -> (i32, i32, i32) {
    %c0_i32 = arith.constant 0 : i32
    %c0_i32_0 = arith.constant 0 : i32
    %c0_i32_1 = arith.constant 0 : i32
    %c0_i32_2 = arith.constant 0 : i32
    return %c0_i32, %c0_i32_0, %c0_i32_1 : i32, i32, i32
  }
  func.func @transform_4(%arg0: i32, %arg1: i32) -> (i32, i32) {
    %c0_i32 = arith.constant 0 : i32
    %c0_i32_0 = arith.constant 0 : i32
    %c0_i32_1 = arith.constant 0 : i32
    return %c0_i32, %c0_i32_0 : i32, i32
  }
  func.func @transform_5(%arg0: i32, %arg1: i32) -> (i32, i32) {
    %c0_i32 = arith.constant 0 : i32
    %c0_i32_0 = arith.constant 0 : i32
    %c0_i32_1 = arith.constant 0 : i32
    return %c0_i32, %c0_i32_0 : i32, i32
  }
  func.func @transform_6(%arg0: i32, %arg1: i32) -> (i32, i32, i32, i32) {
    %c0_i32 = arith.constant 0 : i32
    %c0_i32_0 = arith.constant 0 : i32
    %c0_i32_1 = arith.constant 0 : i32
    return %arg0, %arg1, %c0_i32, %c0_i32_0 : i32, i32, i32, i32
  }
}

</mosaic_0001>

<llo_original>
// kernel: separable_conv.1
$region0: #{separable_conv.1}
  #allocation0 [shape = 'u32[]', space=smem, size = 0x4, offset = 0x4, fixed_abs, tag = 'smem constant byte address 0x4 - core index']
  #allocation1 [shape = 'u32[144,128]{1,0:T(1,128)}', space=vmem, size = 0x12000, scoped, tag = 'internal scratch']
  #allocation2 [shape = 'f32[10,18,4]{2,1,0:T(8,128)}', space=vmem, size = 0x1e000, scoped, tag = 'scratch operand']
  %s0 = inlined_call_operand.vmem [shape: f32[2,16,16,4], index: 0, kind: input, shape index: {}, may-alias: {0,1,2}]
  %s1 = inlined_call_operand.vmem [shape: f32[2,16,16,4], index: 1, kind: input, shape index: {}, may-alias: {0,1,2}]
  %s2 = inlined_call_operand.vmem [shape: f32[2,16,16,4], index: 2, kind: input, shape index: {}, may-alias: {0,1,2}]
  %s3 = inlined_call_operand.vmem [shape: f32[3,3,4], index: 3, kind: input, shape index: {}]
  %s4 = inlined_call_operand.vmem [shape: f32[4,8], index: 4, kind: input, shape index: {}]
  %s5 = inlined_call_operand.vmem [shape: f32[1,8], index: 5, kind: input, shape index: {}]
  %s6 = inlined_call_operand.vmem [shape: f32[2,16,16,8], index: 6, kind: output, shape index: {}]
  %s7 = sld [smem:[#allocation0]]
  $region65: #{separable_conv.1} parent=0
    _
  %s9 = ssub.s32 1, %s7
  %s10 = scalar_select 0, %s9, %s7
  loop: start=0, step=1, limit=6
  $region2: #{separable_conv.1} parent=0 // loop_pre_header
    _
  $region3: #{separable_conv.1} parent=0 // loop_header
    %s12 = sphi 0, %s16
    %p13 = scmp.ge.s32.totalorder %s12, 6
    %s19 = sphi 0, %s31
    %s20 = sphi 0, %s27
    %s21 = sphi 0, %s19
    %s22 = sphi 0, %s20
    %s23 = sphi 0, %s21
    %s24 = sphi 0, %s22
    %s36 = sphi 0, %s38
    %s39 = sphi 0, %s36
    %s40 = sphi 0, %s39
    %s56 = sphi 0, %s40
    %s72 = sphi 0, %s74
    %s75 = sphi 0, %s72
    %s76 = sphi 0, %s75
    %s92 = sphi 0, %s76
    %s108 = sphi 0, %s110
    %s111 = sphi 0, %s108
    %s112 = sphi 0, %s111
    %s128 = sphi 0, %s112
    %s132 = sphi 0, %s132
    %s134 = sphi 0, %s132
    %s135 = sphi 0, %s134
    %s149 = sphi 0, %s135
    %s153 = sphi 0, %s153
    %s155 = sphi 0, %s153
    %s156 = sphi 0, %s155
    %s170 = sphi 0, %s156
    %s174 = sphi 0, %s174
    %s176 = sphi 0, %s174
    %s177 = sphi 0, %s176
    %s191 = sphi 0, %s177
    %s199 = sphi 0, %s201
    %s202 = sphi 0, %s199
    %s203 = sphi 0, %s202
    %s219 = sphi 0, %s203
  $region4: #{separable_conv.1} parent=0 // loop_header_branch
    %15 = sbr.rel (%p13) target = $region8
  $region5: #{separable_conv.1} parent=0 // loop_body
    %s17 = ssub.s32 %s12, 1
    %s18 = ssub.s32 %s12, 2
    %s25 = sadd.s32 1, %s20
    %p26 = scmp.ge.s32.totalorder %s25, 2
    %s27 = scalar_select %p26, 0, %s25
    %s28 = sadd.s32 1, %s19
    %s29 = scalar_select %p26, %s28, %s19
    %p30 = scmp.ge.s32.totalorder %s29, 2
    %s31 = scalar_select %p30, 0, %s29
    %s32 = ssub.s32 %s19, %s31
    %s33 = ssub.s32 %s20, %s27
    %s34 = sor.u32 %s32, %s33
    %p35 = scmp.eq.s32.totalorder %s34, 0
    %s37 = sadd.s32 %s36, 1
    %s38 = scalar_select %p35, %s36, %s37
    %p41 = pneg %p35
    %p42 = scmp.eq.s32.totalorder %s12, 3
    %p43 = por %p41, %p42
    %p44 = scmp.ne.s32.totalorder %s36, %s39
    %p45 = scmp.eq.s32.totalorder %s12, 0
    %p46 = por %p44, %p45
    %p47 = scmp.ne.s32.totalorder %s36, %s39
    %p48 = scmp.eq.s32.totalorder %s17, 3
    %p49 = por %p47, %p48
    %p50 = scmp.ne.s32.totalorder %s39, %s40
    %p51 = scmp.eq.s32.totalorder %s17, 0
    %p52 = por %p50, %p51
    %p53 = scmp.ne.s32.totalorder %s39, %s40
    %p54 = scmp.eq.s32.totalorder %s18, 3
    %p55 = por %p53, %p54
    %p57 = scmp.ne.s32.totalorder %s40, %s56
    %p58 = scmp.eq.s32.totalorder %s18, 0
    %p59 = por %p57, %p58
    %s60 = smul.u32 %s20, 8
    %s61 = ssub.s32 %s60, 1
    %p62 = scmp.gt.s32.totalorder %s61, 0
    %s63 = scalar_select %p62, %s61, 0
    %s64 = smul.u32 %s27, 8
    %s65 = ssub.s32 %s64, 1
    %p66 = scmp.gt.s32.totalorder %s65, 0
    %s67 = scalar_select %p66, %s65, 0
    %s68 = ssub.s32 %s19, %s31
    %s69 = ssub.s32 %s63, %s67
    %s70 = sor.u32 %s68, %s69
    %p71 = scmp.eq.s32.totalorder %s70, 0
    %s73 = sadd.s32 %s72, 1
    %s74 = scalar_select %p71, %s72, %s73
    %p77 = pneg %p71
    %p78 = scmp.eq.s32.totalorder %s12, 3
    %p79 = por %p77, %p78
    %p80 = scmp.ne.s32.totalorder %s72, %s75
    %p81 = scmp.eq.s32.totalorder %s12, 0
    %p82 = por %p80, %p81
    %p83 = scmp.ne.s32.totalorder %s72, %s75
    %p84 = scmp.eq.s32.totalorder %s17, 3
    %p85 = por %p83, %p84
    %p86 = scmp.ne.s32.totalorder %s75, %s76
    %p87 = scmp.eq.s32.totalorder %s17, 0
    %p88 = por %p86, %p87
    %p89 = scmp.ne.s32.totalorder %s75, %s76
    %p90 = scmp.eq.s32.totalorder %s18, 3
    %p91 = por %p89, %p90
    %p93 = scmp.ne.s32.totalorder %s76, %s92
    %p94 = scmp.eq.s32.totalorder %s18, 0
    %p95 = por %p93, %p94
    %s96 = sadd.s32 %s20, 1
    %s97 = smul.u32 %s96, 8
    %p98 = scmp.lt.s32.totalorder %s97, 15
    %s99 = scalar_select %p98, %s97, 15
    %s100 = sadd.s32 %s27, 1
    %s101 = smul.u32 %s100, 8
    %p102 = scmp.lt.s32.totalorder %s101, 15
    %s103 = scalar_select %p102, %s101, 15
    %s104 = ssub.s32 %s19, %s31
    %s105 = ssub.s32 %s99, %s103
    %s106 = sor.u32 %s104, %s105
    %p107 = scmp.eq.s32.totalorder %s106, 0
    %s109 = sadd.s32 %s108, 1
    %s110 = scalar_select %p107, %s108, %s109
    %p113 = pneg %p107
    %p114 = scmp.eq.s32.totalorder %s12, 3
    %p115 = por %p113, %p114
    %p116 = scmp.ne.s32.totalorder %s108, %s111
    %p117 = scmp.eq.s32.totalorder %s12, 0
    %p118 = por %p116, %p117
    %p119 = scmp.ne.s32.totalorder %s108, %s111
    %p120 = scmp.eq.s32.totalorder %s17, 3
    %p121 = por %p119, %p120
    %p122 = scmp.ne.s32.totalorder %s111, %s112
    %p123 = scmp.eq.s32.totalorder %s17, 0
    %p124 = por %p122, %p123
    %p125 = scmp.ne.s32.totalorder %s111, %s112
    %p126 = scmp.eq.s32.totalorder %s18, 3
    %p127 = por %p125, %p126
    %p129 = scmp.ne.s32.totalorder %s112, %s128
    %p130 = scmp.eq.s32.totalorder %s18, 0
    %p131 = por %p129, %p130
    %s133 = sadd.s32 %s132, 1
    %p136 = scmp.eq.s32.totalorder %s12, 3
    %p137 = scmp.ne.s32.totalorder %s132, %s134
    %p138 = scmp.eq.s32.totalorder %s12, 0
    %p139 = por %p137, %p138
    %p140 = scmp.ne.s32.totalorder %s132, %s134
    %p141 = scmp.eq.s32.totalorder %s17, 3
    %p142 = por %p140, %p141
    %p143 = scmp.ne.s32.totalorder %s134, %s135
    %p144 = scmp.eq.s32.totalorder %s17, 0
    %p145 = por %p143, %p144
    %p146 = scmp.ne.s32.totalorder %s134, %s135
    %p147 = scmp.eq.s32.totalorder %s18, 3
    %p148 = por %p146, %p147
    %p150 = scmp.ne.s32.totalorder %s135, %s149
    %p151 = scmp.eq.s32.totalorder %s18, 0
    %p152 = por %p150, %p151
    %s154 = sadd.s32 %s153, 1
    %p157 = scmp.eq.s32.totalorder %s12, 3
    %p158 = scmp.ne.s32.totalorder %s153, %s155
    %p159 = scmp.eq.s32.totalorder %s12, 0
    %p160 = por %p158, %p159
    %p161 = scmp.ne.s32.totalorder %s153, %s155
    %p162 = scmp.eq.s32.totalorder %s17, 3
    %p163 = por %p161, %p162
    %p164 = scmp.ne.s32.totalorder %s155, %s156
    %p165 = scmp.eq.s32.totalorder %s17, 0
    %p166 = por %p164, %p165
    %p167 = scmp.ne.s32.totalorder %s155, %s156
    %p168 = scmp.eq.s32.totalorder %s18, 3
    %p169 = por %p167, %p168
    %p171 = scmp.ne.s32.totalorder %s156, %s170
    %p172 = scmp.eq.s32.totalorder %s18, 0
    %p173 = por %p171, %p172
    %s175 = sadd.s32 %s174, 1
    %p178 = scmp.eq.s32.totalorder %s12, 3
    %p179 = scmp.ne.s32.totalorder %s174, %s176
    %p180 = scmp.eq.s32.totalorder %s12, 0
    %p181 = por %p179, %p180
    %p182 = scmp.ne.s32.totalorder %s174, %s176
    %p183 = scmp.eq.s32.totalorder %s17, 3
    %p184 = por %p182, %p183
    %p185 = scmp.ne.s32.totalorder %s176, %s177
    %p186 = scmp.eq.s32.totalorder %s17, 0
    %p187 = por %p185, %p186
    %p188 = scmp.ne.s32.totalorder %s176, %s177
    %p189 = scmp.eq.s32.totalorder %s18, 3
    %p190 = por %p188, %p189
    %p192 = scmp.ne.s32.totalorder %s177, %s191
    %p193 = scmp.eq.s32.totalorder %s18, 0
    %p194 = por %p192, %p193
    %s195 = ssub.s32 %s19, %s31
    %s196 = ssub.s32 %s20, %s27
    %s197 = sor.u32 %s195, %s196
    %p198 = scmp.eq.s32.totalorder %s197, 0
    %s200 = sadd.s32 %s199, 1
    %s201 = scalar_select %p198, %s199, %s200
    %p204 = pneg %p198
    %p205 = scmp.eq.s32.totalorder %s12, 3
    %p206 = por %p204, %p205
    %p207 = scmp.ne.s32.totalorder %s199, %s202
    %p208 = scmp.eq.s32.totalorder %s12, 0
    %p209 = por %p207, %p208
    %p210 = scmp.ne.s32.totalorder %s199, %s202
    %p211 = scmp.eq.s32.totalorder %s17, 3
    %p212 = por %p210, %p211
    %p213 = scmp.ne.s32.totalorder %s202, %s203
    %p214 = scmp.eq.s32.totalorder %s17, 0
    %p215 = por %p213, %p214
    %p216 = scmp.ne.s32.totalorder %s202, %s203
    %p217 = scmp.eq.s32.totalorder %s18, 3
    %p218 = por %p216, %p217
    %p220 = scmp.ne.s32.totalorder %s203, %s219
    %p221 = scmp.eq.s32.totalorder %s18, 0
    %p222 = por %p220, %p221
    %p223 = scmp.le.s32.totalorder 1, %s12
    %p224 = scmp.lt.s32.totalorder %s12, 5
    %p225 = pnand %p223, %p224
    %p226 = pneg %p225
    // Predicated region
    $region9: #{separable_conv.1} parent=5 // pred_check
      _
    $region10: #{separable_conv.1} parent=5 // pred_check_branch
      %228 = sbr.rel (%p225) target = $region12
    $region11: #{separable_conv.1} parent=5 // pred_region
      %s229 = ssub.s32 %s12, 1
      // Predicated region
      $region13: #{separable_conv.1} parent=11 // pred_check
        %p230 = pneg %p145
      $region14: #{separable_conv.1} parent=11 // pred_check_branch
        %232 = sbr.rel (%p230) target = $region16
      $region15: #{separable_conv.1} parent=11 // pred_region
        _
      $region16: #{separable_conv.1} parent=11 // pred_fallthru
        _
      // Predicated region
      $region17: #{separable_conv.1} parent=11 // pred_check
        %p233 = pneg %p166
      $region18: #{separable_conv.1} parent=11 // pred_check_branch
        %235 = sbr.rel (%p233) target = $region20
      $region19: #{separable_conv.1} parent=11 // pred_region
        _
      $region20: #{separable_conv.1} parent=11 // pred_fallthru
        _
      // Predicated region
      $region21: #{separable_conv.1} parent=11 // pred_check
        %p236 = pneg %p187
      $region22: #{separable_conv.1} parent=11 // pred_check_branch
        %238 = sbr.rel (%p236) target = $region24
      $region23: #{separable_conv.1} parent=11 // pred_region
        _
      $region24: #{separable_conv.1} parent=11 // pred_fallthru
        _
    $region12: #{separable_conv.1} parent=5 // pred_fallthru
      _
    %p239 = scmp.lt.s32.totalorder %s12, 4
    // Predicated region
    $region25: #{separable_conv.1} parent=5 // pred_check
      %p240 = pneg %p239
    $region26: #{separable_conv.1} parent=5 // pred_check_branch
      %242 = sbr.rel (%p240) target = $region28
    $region27: #{separable_conv.1} parent=5 // pred_region
      // Predicated region
      $region29: #{separable_conv.1} parent=27 // pred_check
        %p243 = pneg %p46
      $region30: #{separable_conv.1} parent=27 // pred_check_branch
        %245 = sbr.rel (%p243) target = $region32
      $region31: #{separable_conv.1} parent=27 // pred_region
        %s246 = smul.u32 8, %s20
        %p247 = scmp.lt.s32.totalorder %s19, 1
        %s248 = scalar_select %p247, %s19, 1
        %p249 = scmp.lt.s32.totalorder %s246, 15
        %s250 = scalar_select %p249, %s246, 15
        %s251 = smul.addr %s250, 2
        %s252 = smul.addr %s248, 32
        %s253 = sadd.s32 %s251, %s252
        %s254 = smul.addr %s253, 8
        %s255 = scalar_lea.vmem %s0, %s254
        %s256 = smul.u32 8, %s20
      $region32: #{separable_conv.1} parent=27 // pred_fallthru
        _
      // Predicated region
      $region33: #{separable_conv.1} parent=27 // pred_check
        %p257 = pneg %p82
      $region34: #{separable_conv.1} parent=27 // pred_check_branch
        %259 = sbr.rel (%p257) target = $region36
      $region35: #{separable_conv.1} parent=27 // pred_region
        %s260 = smul.u32 %s20, 8
        %s261 = ssub.s32 %s260, 1
        %p262 = scmp.gt.s32.totalorder %s261, 0
        %s263 = scalar_select %p262, %s261, 0
        %p264 = scmp.lt.s32.totalorder %s19, 1
        %s265 = scalar_select %p264, %s19, 1
        %p266 = scmp.lt.s32.totalorder %s263, 15
        %s267 = scalar_select %p266, %s263, 15
        %s268 = smul.addr %s267, 2
        %s269 = smul.addr %s265, 32
        %s270 = sadd.s32 %s268, %s269
        %s271 = smul.addr %s270, 8
        %s272 = scalar_lea.vmem %s1, %s271
        %s273 = smul.u32 %s20, 8
        %s274 = ssub.s32 %s273, 1
        %p275 = scmp.gt.s32.totalorder %s274, 0
        %s276 = scalar_select %p275, %s274, 0
      $region36: #{separable_conv.1} parent=27 // pred_fallthru
        _
      // Predicated region
      $region37: #{separable_conv.1} parent=27 // pred_check
        %p277 = pneg %p118
      $region38: #{separable_conv.1} parent=27 // pred_check_branch
        %279 = sbr.rel (%p277) target = $region40
      $region39: #{separable_conv.1} parent=27 // pred_region
        %s280 = sadd.s32 %s20, 1
        %s281 = smul.u32 %s280, 8
        %p282 = scmp.lt.s32.totalorder %s281, 15
        %s283 = scalar_select %p282, %s281, 15
        %p284 = scmp.lt.s32.totalorder %s19, 1
        %s285 = scalar_select %p284, %s19, 1
        %p286 = scmp.lt.s32.totalorder %s283, 15
        %s287 = scalar_select %p286, %s283, 15
        %s288 = smul.addr %s287, 2
        %s289 = smul.addr %s285, 32
        %s290 = sadd.s32 %s288, %s289
        %s291 = smul.addr %s290, 8
        %s292 = scalar_lea.vmem %s2, %s291
        %s293 = sadd.s32 %s20, 1
        %s294 = smul.u32 %s293, 8
        %p295 = scmp.lt.s32.totalorder %s294, 15
        %s296 = scalar_select %p295, %s294, 15
      $region40: #{separable_conv.1} parent=27 // pred_fallthru
        _
    $region28: #{separable_conv.1} parent=5 // pred_fallthru
      _
    %p297 = scmp.le.s32.totalorder 1, %s12
    %p298 = scmp.lt.s32.totalorder %s12, 5
    %p299 = pnand %p297, %p298
    %p300 = pneg %p299
    // Predicated region
    $region41: #{separable_conv.1} parent=5 // pred_check
      _
    $region42: #{separable_conv.1} parent=5 // pred_check_branch
      %302 = sbr.rel (%p299) target = $region44
    $region43: #{separable_conv.1} parent=5 // pred_region
      %s303 = ssub.s32 %s12, 1
      %s304 = smul.u32 8, %s22
      %p305 = scmp.lt.s32.totalorder %s21, 1
      %s306 = scalar_select %p305, %s21, 1
      %p307 = scmp.lt.s32.totalorder %s304, 15
      %s308 = scalar_select %p307, %s304, 15
      %s309 = smul.addr %s308, 2
      %s310 = smul.addr %s306, 32
      %s311 = sadd.s32 %s309, %s310
      %s312 = smul.addr %s311, 8
      %s313 = scalar_lea.vmem %s0, %s312
      %p314 = pneg %p52
      %p315 = pneg %p49
      %s316 = smul.u32 %s22, 8
      %s317 = ssub.s32 %s316, 1
      %p318 = scmp.gt.s32.totalorder %s317, 0
      %s319 = scalar_select %p318, %s317, 0
      %p320 = scmp.lt.s32.totalorder %s21, 1
      %s321 = scalar_select %p320, %s21, 1
      %p322 = scmp.lt.s32.totalorder %s319, 15
      %s323 = scalar_select %p322, %s319, 15
      %s324 = smul.addr %s323, 2
      %s325 = smul.addr %s321, 32
      %s326 = sadd.s32 %s324, %s325
      %s327 = smul.addr %s326, 8
      %s328 = scalar_lea.vmem %s1, %s327
      %p329 = pneg %p88
      %p330 = pneg %p85
      %s331 = sadd.s32 %s22, 1
      %s332 = smul.u32 %s331, 8
      %p333 = scmp.lt.s32.totalorder %s332, 15
      %s334 = scalar_select %p333, %s332, 15
      %p335 = scmp.lt.s32.totalorder %s21, 1
      %s336 = scalar_select %p335, %s21, 1
      %p337 = scmp.lt.s32.totalorder %s334, 15
      %s338 = scalar_select %p337, %s334, 15
      %s339 = smul.addr %s338, 2
      %s340 = smul.addr %s336, 32
      %s341 = sadd.s32 %s339, %s340
      %s342 = smul.addr %s341, 8
      %s343 = scalar_lea.vmem %s2, %s342
      %p344 = pneg %p124
      %p345 = pneg %p121
      %p346 = pneg %p145
      %p347 = pneg %p142
      %p348 = pneg %p166
      %p349 = pneg %p163
      %p350 = pneg %p187
      %p351 = pneg %p184
      %p352 = pneg %p215
      %p353 = pneg %p212
      %s354 = smul.u32 8, %s22
      %p355 = scmp.lt.s32.totalorder %s21, 1
      %s356 = scalar_select %p355, %s21, 1
      %p357 = scmp.lt.s32.totalorder %s354, 15
      %s358 = scalar_select %p357, %s354, 15
      %s359 = smul.addr %s358, 2
      %s360 = smul.addr %s356, 32
      %s361 = sadd.s32 %s359, %s360
      %s362 = smul.addr %s361, 8
      %s363 = scalar_lea.vmem %s6, %s362
      %s364 = smul.u32 8, %s22
      %p365 = scmp.lt.s32.totalorder %s21, 1
      %s366 = scalar_select %p365, %s21, 1
      %p367 = scmp.lt.s32.totalorder %s364, 15
      %s368 = scalar_select %p367, %s364, 15
      %s369 = smul.addr %s368, 2
      %s370 = smul.addr %s366, 32
      %s371 = sadd.s32 %s369, %s370
      %s372 = smul.addr %s371, 8
      %s373 = scalar_lea.vmem %s0, %s372
      %s374 = smul.u32 8, %s22
      %s375 = smul.u32 %s22, 8
      %s376 = ssub.s32 %s375, 1
      %p377 = scmp.gt.s32.totalorder %s376, 0
      %s378 = scalar_select %p377, %s376, 0
      %p379 = scmp.lt.s32.totalorder %s21, 1
      %s380 = scalar_select %p379, %s21, 1
      %p381 = scmp.lt.s32.totalorder %s378, 15
      %s382 = scalar_select %p381, %s378, 15
      %s383 = smul.addr %s382, 2
      %s384 = smul.addr %s380, 32
      %s385 = sadd.s32 %s383, %s384
      %s386 = smul.addr %s385, 8
      %s387 = scalar_lea.vmem %s1, %s386
      %s388 = smul.u32 %s22, 8
      %s389 = ssub.s32 %s388, 1
      %p390 = scmp.gt.s32.totalorder %s389, 0
      %s391 = scalar_select %p390, %s389, 0
      %s392 = sadd.s32 %s22, 1
      %s393 = smul.u32 %s392, 8
      %p394 = scmp.lt.s32.totalorder %s393, 15
      %s395 = scalar_select %p394, %s393, 15
      %p396 = scmp.lt.s32.totalorder %s21, 1
      %s397 = scalar_select %p396, %s21, 1
      %p398 = scmp.lt.s32.totalorder %s395, 15
      %s399 = scalar_select %p398, %s395, 15
      %s400 = smul.addr %s399, 2
      %s401 = smul.addr %s397, 32
      %s402 = sadd.s32 %s400, %s401
      %s403 = smul.addr %s402, 8
      %s404 = scalar_lea.vmem %s2, %s403
      %s405 = sadd.s32 %s22, 1
      %s406 = smul.u32 %s405, 8
      %p407 = scmp.lt.s32.totalorder %s406, 15
      %s408 = scalar_select %p407, %s406, 15
      %s409 = smul.u32 8, %s22
      %p410 = scmp.lt.s32.totalorder %s21, 1
      %s411 = scalar_select %p410, %s21, 1
      %p412 = scmp.lt.s32.totalorder %s409, 15
      %s413 = scalar_select %p412, %s409, 15
      %s414 = smul.addr %s413, 2
      %s415 = smul.addr %s411, 32
      %s416 = sadd.s32 %s414, %s415
      %s417 = smul.addr %s416, 8
      %s418 = scalar_lea.vmem %s6, %s417
      %s419 = smul.u32 8, %s22
      %vm420 = vcmask 24576
      %421 = vst.msk [vmem:[#allocation2] sm:$0x1] %vm420, 0.0
      %422 = vst.msk [vmem:[#allocation2 + $0x18] sm:$0x1] %vm420, 0.0
      %423 = vst.msk [vmem:[#allocation2 + $0x30] sm:$0x1] %vm420, 0.0
      %424 = vst.msk [vmem:[#allocation2 + $0x48] sm:$0x1] %vm420, 0.0
      %425 = vst.msk [vmem:[#allocation2 + $0x60] sm:$0x1] %vm420, 0.0
      %426 = vst.msk [vmem:[#allocation2 + $0x78] sm:$0x1] %vm420, 0.0
      %427 = vst.msk [vmem:[#allocation2 + $0x90] sm:$0x1] %vm420, 0.0
      %428 = vst.msk [vmem:[#allocation2 + $0xa8] sm:$0x1] %vm420, 0.0
      %429 = vst.msk [vmem:[#allocation2 + $0xc0] sm:$0x1] %vm420, 0.0
      %430 = vst.msk [vmem:[#allocation2 + $0xd8] sm:$0x1] %vm420, 0.0
      %431 = vst.msk [vmem:[#allocation2 + $0x11] sm:$0x1] %vm420, 0.0
      %432 = vst.msk [vmem:[#allocation2 + $0x29] sm:$0x1] %vm420, 0.0
      %433 = vst.msk [vmem:[#allocation2 + $0x41] sm:$0x1] %vm420, 0.0
      %434 = vst.msk [vmem:[#allocation2 + $0x59] sm:$0x1] %vm420, 0.0
      %435 = vst.msk [vmem:[#allocation2 + $0x71] sm:$0x1] %vm420, 0.0
      %436 = vst.msk [vmem:[#allocation2 + $0x89] sm:$0x1] %vm420, 0.0
      %437 = vst.msk [vmem:[#allocation2 + $0xa1] sm:$0x1] %vm420, 0.0
      %438 = vst.msk [vmem:[#allocation2 + $0xb9] sm:$0x1] %vm420, 0.0
      %439 = vst.msk [vmem:[#allocation2 + $0xd1] sm:$0x1] %vm420, 0.0
      %440 = vst.msk [vmem:[#allocation2 + $0xe9] sm:$0x1] %vm420, 0.0
      %v441 = vld [vmem:[%s373] sm:$0xff]
      %v442 = vld [vmem:[%s373 + $0x8] sm:$0xff]
      %v443 = vld [vmem:[%s373 + $0x10] sm:$0xff]
      %v444 = vld [vmem:[%s373 + $0x18] sm:$0xff]
      %v445 = vld [vmem:[%s373 + $0x20] sm:$0xff]
      %v446 = vld [vmem:[%s373 + $0x28] sm:$0xff]
      %v447 = vld [vmem:[%s373 + $0x30] sm:$0xff]
      %v448 = vld [vmem:[%s373 + $0x38] sm:$0xff]
      %v449 = vld [vmem:[%s373 + $0x40] sm:$0xff]
      %v450 = vld [vmem:[%s373 + $0x48] sm:$0xff]
      %v451 = vld [vmem:[%s373 + $0x50] sm:$0xff]
      %v452 = vld [vmem:[%s373 + $0x58] sm:$0xff]
      %v453 = vld [vmem:[%s373 + $0x60] sm:$0xff]
      %v454 = vld [vmem:[%s373 + $0x68] sm:$0xff]
      %v455 = vld [vmem:[%s373 + $0x70] sm:$0xff]
      %v456 = vld [vmem:[%s373 + $0x78] sm:$0xff]
      %s457 = scalar_lea.vmem [#allocation2], 24
      %vm458 = vcmask 31744
      %459 = vst.msk [vmem:[%s457 + $0x1] sm:$0xff] %vm458, %v441
      %460 = vst.msk [vmem:[%s457 + $0x9] sm:$0xff] %vm458, %v442
      %461 = vst.msk [vmem:[%s457 + $0x19] sm:$0xff] %vm458, %v443
      %462 = vst.msk [vmem:[%s457 + $0x21] sm:$0xff] %vm458, %v444
      %463 = vst.msk [vmem:[%s457 + $0x31] sm:$0xff] %vm458, %v445
      %464 = vst.msk [vmem:[%s457 + $0x39] sm:$0xff] %vm458, %v446
      %465 = vst.msk [vmem:[%s457 + $0x49] sm:$0xff] %vm458, %v447
      %466 = vst.msk [vmem:[%s457 + $0x51] sm:$0xff] %vm458, %v448
      %467 = vst.msk [vmem:[%s457 + $0x61] sm:$0xff] %vm458, %v449
      %468 = vst.msk [vmem:[%s457 + $0x69] sm:$0xff] %vm458, %v450
      %469 = vst.msk [vmem:[%s457 + $0x79] sm:$0xff] %vm458, %v451
      %470 = vst.msk [vmem:[%s457 + $0x81] sm:$0xff] %vm458, %v452
      %471 = vst.msk [vmem:[%s457 + $0x91] sm:$0xff] %vm458, %v453
      %472 = vst.msk [vmem:[%s457 + $0x99] sm:$0xff] %vm458, %v454
      %473 = vst.msk [vmem:[%s457 + $0xa9] sm:$0xff] %vm458, %v455
      %474 = vst.msk [vmem:[%s457 + $0xb1] sm:$0xff] %vm458, %v456
      %v475 = vld [vmem:[%s387] sm:$0xff]
      %v476 = vld [vmem:[%s387 + $0x8] sm:$0xff]
      %477 = vst.msk [vmem:[#allocation2 + $0x1] sm:$0xff] %vm458, %v475
      %478 = vst.msk [vmem:[#allocation2 + $0x9] sm:$0xff] %vm458, %v476
      %p479 = scmp.eq.s32.totalorder %s22, 0
      // Predicated region
      $region45: #{separable_conv.1} parent=43 // pred_check
        %p480 = pneg %p479
      $region46: #{separable_conv.1} parent=43 // pred_check_branch
        %482 = sbr.rel (%p480) target = $region48
      $region47: #{separable_conv.1} parent=43 // pred_region
        %483 = vst.msk [vmem:[#allocation2 + $0x1] sm:$0xff] %vm458, 0.0
        %484 = vst.msk [vmem:[#allocation2 + $0x9] sm:$0xff] %vm458, 0.0
      $region48: #{separable_conv.1} parent=43 // pred_fallthru
        _
      %v485 = vld [vmem:[%s404] sm:$0xff]
      %v486 = vld [vmem:[%s404 + $0x8] sm:$0xff]
      %s487 = scalar_lea.vmem [#allocation2], 216
      %488 = vst.msk [vmem:[%s487 + $0x1] sm:$0xff] %vm458, %v485
      %489 = vst.msk [vmem:[%s487 + $0x9] sm:$0xff] %vm458, %v486
      %p490 = scmp.eq.s32.totalorder %s22, 1
      // Predicated region
      $region49: #{separable_conv.1} parent=43 // pred_check
        %p491 = pneg %p490
      $region50: #{separable_conv.1} parent=43 // pred_check_branch
        %493 = sbr.rel (%p491) target = $region52
      $region51: #{separable_conv.1} parent=43 // pred_region
        %494 = vst.msk [vmem:[%s487 + $0x1] sm:$0xff] %vm458, 0.0
        %495 = vst.msk [vmem:[%s487 + $0x9] sm:$0xff] %vm458, 0.0
      $region52: #{separable_conv.1} parent=43 // pred_fallthru
        _
      %v496 = vld [vmem:[#allocation2] sm:$0xff]
      %v497 = vld [vmem:[#allocation2 + $0x8] sm:$0xff]
      %v498 = vld [vmem:[#allocation2 + $0x10] sm:$0x3]
      %v499 = vld [vmem:[#allocation2 + $0x18] sm:$0xff]
      %v500 = vld [vmem:[#allocation2 + $0x20] sm:$0xff]
      %v501 = vld [vmem:[#allocation2 + $0x28] sm:$0x3]
      %v502 = vld [vmem:[#allocation2 + $0x30] sm:$0xff]
      %v503 = vld [vmem:[#allocation2 + $0x38] sm:$0xff]
      %v504 = vld [vmem:[#allocation2 + $0x40] sm:$0x3]
      %v505 = vld [vmem:[#allocation2 + $0x48] sm:$0xff]
      %v506 = vld [vmem:[#allocation2 + $0x50] sm:$0xff]
      %v507 = vld [vmem:[#allocation2 + $0x58] sm:$0x3]
      %v508 = vld [vmem:[#allocation2 + $0x60] sm:$0xff]
      %v509 = vld [vmem:[#allocation2 + $0x68] sm:$0xff]
      %v510 = vld [vmem:[#allocation2 + $0x70] sm:$0x3]
      %v511 = vld [vmem:[#allocation2 + $0x78] sm:$0xff]
      %v512 = vld [vmem:[#allocation2 + $0x80] sm:$0xff]
      %v513 = vld [vmem:[#allocation2 + $0x88] sm:$0x3]
      %v514 = vld [vmem:[#allocation2 + $0x90] sm:$0xff]
      %v515 = vld [vmem:[#allocation2 + $0x98] sm:$0xff]
      %v516 = vld [vmem:[#allocation2 + $0xa0] sm:$0x3]
      %v517 = vld [vmem:[#allocation2 + $0xa8] sm:$0xff]
      %v518 = vld [vmem:[#allocation2 + $0xb0] sm:$0xff]
      %v519 = vld [vmem:[#allocation2 + $0xb8] sm:$0x3]
      %v520 = vld [vmem:[#allocation2 + $0xc0] sm:$0xff]
      %v521 = vld [vmem:[#allocation2 + $0xc8] sm:$0xff]
      %v522 = vld [vmem:[#allocation2 + $0xd0] sm:$0x3]
      %v523 = vld [vmem:[#allocation2 + $0xd8] sm:$0xff]
      %v524 = vld [vmem:[#allocation2 + $0xe0] sm:$0xff]
      %v525 = vld [vmem:[#allocation2 + $0xe8] sm:$0x3]
      %v526 = vld [vmem:[%s3] sm:$0x7]
      %v527 = vld [vmem:[%s3 + $0x4] sm:$0x7]
      %v528 = vld [vmem:[%s3 + $0x8] sm:$0x7]
      %v529 = vlaneseq
      %v530 = vshrl.u32 %v529, 7
      %v531 = vsub.s32 0, %v530
      %v532 = vrot.slane %v526, %v531
      %v533 = vmul.f32 %v496, %v532
      %v534 = vmul.f32 %v497, %v532
      %v535 = vmul.f32 %v499, %v532
      %v536 = vmul.f32 %v500, %v532
      %v537 = vmul.f32 %v502, %v532
      %v538 = vmul.f32 %v503, %v532
      %v539 = vmul.f32 %v505, %v532
      %v540 = vmul.f32 %v506, %v532
      %v541 = vmul.f32 %v508, %v532
      %v542 = vmul.f32 %v509, %v532
      %v543 = vmul.f32 %v511, %v532
      %v544 = vmul.f32 %v512, %v532
      %v545 = vmul.f32 %v514, %v532
      %v546 = vmul.f32 %v515, %v532
      %v547 = vmul.f32 %v517, %v532
      %v548 = vmul.f32 %v518, %v532
      %v549 = vadd.f32 %v533, 0.0
      %v550 = vadd.f32 %v534, 0.0
      %v551 = vadd.f32 %v535, 0.0
      %v552 = vadd.f32 %v536, 0.0
      %v553 = vadd.f32 %v537, 0.0
      %v554 = vadd.f32 %v538, 0.0
      %v555 = vadd.f32 %v539, 0.0
      %v556 = vadd.f32 %v540, 0.0
      %v557 = vadd.f32 %v541, 0.0
      %v558 = vadd.f32 %v542, 0.0
      %v559 = vadd.f32 %v543, 0.0
      %v560 = vadd.f32 %v544, 0.0
      %v561 = vadd.f32 %v545, 0.0
      %v562 = vadd.f32 %v546, 0.0
      %v563 = vadd.f32 %v547, 0.0
      %v564 = vadd.f32 %v548, 0.0
      %v565 = vlaneseq
      %v566 = vshrl.u32 %v565, 7
      %v567 = vsub.s32 1, %v566
      %v568 = vrot.slane %v526, %v567
      %v569 = vmul.f32 %v496, %v568
      %v570 = vmul.f32 %v497, %v568
      %v571 = vmul.f32 %v498, %v568
      %v572 = vmul.f32 %v499, %v568
      %v573 = vmul.f32 %v500, %v568
      %v574 = vmul.f32 %v501, %v568
      %v575 = vmul.f32 %v502, %v568
      %v576 = vmul.f32 %v503, %v568
      %v577 = vmul.f32 %v504, %v568
      %v578 = vmul.f32 %v505, %v568
      %v579 = vmul.f32 %v506, %v568
      %v580 = vmul.f32 %v507, %v568
      %v581 = vmul.f32 %v508, %v568
      %v582 = vmul.f32 %v509, %v568
      %v583 = vmul.f32 %v510, %v568
      %v584 = vmul.f32 %v511, %v568
      %v585 = vmul.f32 %v512, %v568
      %v586 = vmul.f32 %v513, %v568
      %v587 = vmul.f32 %v514, %v568
      %v588 = vmul.f32 %v515, %v568
      %v589 = vmul.f32 %v516, %v568
      %v590 = vmul.f32 %v517, %v568
      %v591 = vmul.f32 %v518, %v568
      %v592 = vmul.f32 %v519, %v568
      %vm617 = vcmask 1046528
      %v618 = vrot.slane %v569, 1
      %v619 = vrot.slane %v570, 1
      %v620 = vsel %vm617, %v618, %v619
      %v621 = vrot.slane %v571, 1
      %v622 = vsel %vm617, %v619, %v621
      %v623 = vrot.slane %v572, 1
      %v624 = vrot.slane %v573, 1
      %v625 = vsel %vm617, %v623, %v624
      %v626 = vrot.slane %v574, 1
      %v627 = vsel %vm617, %v624, %v626
      %v628 = vrot.slane %v575, 1
      %v629 = vrot.slane %v576, 1
      %v630 = vsel %vm617, %v628, %v629
      %v631 = vrot.slane %v577, 1
      %v632 = vsel %vm617, %v629, %v631
      %v633 = vrot.slane %v578, 1
      %v634 = vrot.slane %v579, 1
      %v635 = vsel %vm617, %v633, %v634
      %v636 = vrot.slane %v580, 1
      %v637 = vsel %vm617, %v634, %v636
      %v638 = vrot.slane %v581, 1
      %v639 = vrot.slane %v582, 1
      %v640 = vsel %vm617, %v638, %v639
      %v641 = vrot.slane %v583, 1
      %v642 = vsel %vm617, %v639, %v641
      %v643 = vrot.slane %v584, 1
      %v644 = vrot.slane %v585, 1
      %v645 = vsel %vm617, %v643, %v644
      %v646 = vrot.slane %v586, 1
      %v647 = vsel %vm617, %v644, %v646
      %v648 = vrot.slane %v587, 1
      %v649 = vrot.slane %v588, 1
      %v650 = vsel %vm617, %v648, %v649
      %v651 = vrot.slane %v589, 1
      %v652 = vsel %vm617, %v649, %v651
      %v653 = vrot.slane %v590, 1
      %v654 = vrot.slane %v591, 1
      %v655 = vsel %vm617, %v653, %v654
      %v656 = vrot.slane %v592, 1
      %v657 = vsel %vm617, %v654, %v656
      %v674 = vadd.f32 %v549, %v620
      %v675 = vadd.f32 %v550, %v622
      %v676 = vadd.f32 %v551, %v625
      %v677 = vadd.f32 %v552, %v627
      %v678 = vadd.f32 %v553, %v630
      %v679 = vadd.f32 %v554, %v632
      %v680 = vadd.f32 %v555, %v635
      %v681 = vadd.f32 %v556, %v637
      %v682 = vadd.f32 %v557, %v640
      %v683 = vadd.f32 %v558, %v642
      %v684 = vadd.f32 %v559, %v645
      %v685 = vadd.f32 %v560, %v647
      %v686 = vadd.f32 %v561, %v650
      %v687 = vadd.f32 %v562, %v652
      %v688 = vadd.f32 %v563, %v655
      %v689 = vadd.f32 %v564, %v657
      %v690 = vlaneseq
      %v691 = vshrl.u32 %v690, 7
      %v692 = vsub.s32 2, %v691
      %v693 = vrot.slane %v526, %v692
      %v694 = vmul.f32 %v496, %v693
      %v695 = vmul.f32 %v497, %v693
      %v696 = vmul.f32 %v498, %v693
      %v697 = vmul.f32 %v499, %v693
      %v698 = vmul.f32 %v500, %v693
      %v699 = vmul.f32 %v501, %v693
      %v700 = vmul.f32 %v502, %v693
      %v701 = vmul.f32 %v503, %v693
      %v702 = vmul.f32 %v504, %v693
      %v703 = vmul.f32 %v505, %v693
      %v704 = vmul.f32 %v506, %v693
      %v705 = vmul.f32 %v507, %v693
      %v706 = vmul.f32 %v508, %v693
      %v707 = vmul.f32 %v509, %v693
      %v708 = vmul.f32 %v510, %v693
      %v709 = vmul.f32 %v511, %v693
      %v710 = vmul.f32 %v512, %v693
      %v711 = vmul.f32 %v513, %v693
      %v712 = vmul.f32 %v514, %v693
      %v713 = vmul.f32 %v515, %v693
      %v714 = vmul.f32 %v516, %v693
      %v715 = vmul.f32 %v517, %v693
      %v716 = vmul.f32 %v518, %v693
      %v717 = vmul.f32 %v519, %v693
      %vm742 = vcmask 1045504
      %v743 = vrot.slane %v694, 2
      %v744 = vrot.slane %v695, 2
      %v745 = vsel %vm742, %v743, %v744
      %v746 = vrot.slane %v696, 2
      %v747 = vsel %vm742, %v744, %v746
      %v748 = vrot.slane %v697, 2
      %v749 = vrot.slane %v698, 2
      %v750 = vsel %vm742, %v748, %v749
      %v751 = vrot.slane %v699, 2
      %v752 = vsel %vm742, %v749, %v751
      %v753 = vrot.slane %v700, 2
      %v754 = vrot.slane %v701, 2
      %v755 = vsel %vm742, %v753, %v754
      %v756 = vrot.slane %v702, 2
      %v757 = vsel %vm742, %v754, %v756
      %v758 = vrot.slane %v703, 2
      %v759 = vrot.slane %v704, 2
      %v760 = vsel %vm742, %v758, %v759
      %v761 = vrot.slane %v705, 2
      %v762 = vsel %vm742, %v759, %v761
      %v763 = vrot.slane %v706, 2
      %v764 = vrot.slane %v707, 2
      %v765 = vsel %vm742, %v763, %v764
      %v766 = vrot.slane %v708, 2
      %v767 = vsel %vm742, %v764, %v766
      %v768 = vrot.slane %v709, 2
      %v769 = vrot.slane %v710, 2
      %v770 = vsel %vm742, %v768, %v769
      %v771 = vrot.slane %v711, 2
      %v772 = vsel %vm742, %v769, %v771
      %v773 = vrot.slane %v712, 2
      %v774 = vrot.slane %v713, 2
      %v775 = vsel %vm742, %v773, %v774
      %v776 = vrot.slane %v714, 2
      %v777 = vsel %vm742, %v774, %v776
      %v778 = vrot.slane %v715, 2
      %v779 = vrot.slane %v716, 2
      %v780 = vsel %vm742, %v778, %v779
      %v781 = vrot.slane %v717, 2
      %v782 = vsel %vm742, %v779, %v781
      %v799 = vadd.f32 %v674, %v745
      %v800 = vadd.f32 %v675, %v747
      %v801 = vadd.f32 %v676, %v750
      %v802 = vadd.f32 %v677, %v752
      %v803 = vadd.f32 %v678, %v755
      %v804 = vadd.f32 %v679, %v757
      %v805 = vadd.f32 %v680, %v760
      %v806 = vadd.f32 %v681, %v762
      %v807 = vadd.f32 %v682, %v765
      %v808 = vadd.f32 %v683, %v767
      %v809 = vadd.f32 %v684, %v770
      %v810 = vadd.f32 %v685, %v772
      %v811 = vadd.f32 %v686, %v775
      %v812 = vadd.f32 %v687, %v777
      %v813 = vadd.f32 %v688, %v780
      %v814 = vadd.f32 %v689, %v782
      %v815 = vlaneseq
      %v816 = vshrl.u32 %v815, 7
      %v817 = vsub.s32 0, %v816
      %v818 = vrot.slane %v527, %v817
      %v819 = vmul.f32 %v499, %v818
      %v820 = vmul.f32 %v500, %v818
      %v821 = vmul.f32 %v502, %v818
      %v822 = vmul.f32 %v503, %v818
      %v823 = vmul.f32 %v505, %v818
      %v824 = vmul.f32 %v506, %v818
      %v825 = vmul.f32 %v508, %v818
      %v826 = vmul.f32 %v509, %v818
      %v827 = vmul.f32 %v511, %v818
      %v828 = vmul.f32 %v512, %v818
      %v829 = vmul.f32 %v514, %v818
      %v830 = vmul.f32 %v515, %v818
      %v831 = vmul.f32 %v517, %v818
      %v832 = vmul.f32 %v518, %v818
      %v833 = vmul.f32 %v520, %v818
      %v834 = vmul.f32 %v521, %v818
      %v835 = vadd.f32 %v799, %v819
      %v836 = vadd.f32 %v800, %v820
      %v837 = vadd.f32 %v801, %v821
      %v838 = vadd.f32 %v802, %v822
      %v839 = vadd.f32 %v803, %v823
      %v840 = vadd.f32 %v804, %v824
      %v841 = vadd.f32 %v805, %v825
      %v842 = vadd.f32 %v806, %v826
      %v843 = vadd.f32 %v807, %v827
      %v844 = vadd.f32 %v808, %v828
      %v845 = vadd.f32 %v809, %v829
      %v846 = vadd.f32 %v810, %v830
      %v847 = vadd.f32 %v811, %v831
      %v848 = vadd.f32 %v812, %v832
      %v849 = vadd.f32 %v813, %v833
      %v850 = vadd.f32 %v814, %v834
      %v851 = vlaneseq
      %v852 = vshrl.u32 %v851, 7
      %v853 = vsub.s32 1, %v852
      %v854 = vrot.slane %v527, %v853
      %v855 = vmul.f32 %v499, %v854
      %v856 = vmul.f32 %v500, %v854
      %v857 = vmul.f32 %v501, %v854
      %v858 = vmul.f32 %v502, %v854
      %v859 = vmul.f32 %v503, %v854
      %v860 = vmul.f32 %v504, %v854
      %v861 = vmul.f32 %v505, %v854
      %v862 = vmul.f32 %v506, %v854
      %v863 = vmul.f32 %v507, %v854
      %v864 = vmul.f32 %v508, %v854
      %v865 = vmul.f32 %v509, %v854
      %v866 = vmul.f32 %v510, %v854
      %v867 = vmul.f32 %v511, %v854
      %v868 = vmul.f32 %v512, %v854
      %v869 = vmul.f32 %v513, %v854
      %v870 = vmul.f32 %v514, %v854
      %v871 = vmul.f32 %v515, %v854
      %v872 = vmul.f32 %v516, %v854
      %v873 = vmul.f32 %v517, %v854
      %v874 = vmul.f32 %v518, %v854
      %v875 = vmul.f32 %v519, %v854
      %v876 = vmul.f32 %v520, %v854
      %v877 = vmul.f32 %v521, %v854
      %v878 = vmul.f32 %v522, %v854
      %v903 = vrot.slane %v855, 1
      %v904 = vrot.slane %v856, 1
      %v905 = vsel %vm617, %v903, %v904
      %v906 = vrot.slane %v857, 1
      %v907 = vsel %vm617, %v904, %v906
      %v908 = vrot.slane %v858, 1
      %v909 = vrot.slane %v859, 1
      %v910 = vsel %vm617, %v908, %v909
      %v911 = vrot.slane %v860, 1
      %v912 = vsel %vm617, %v909, %v911
      %v913 = vrot.slane %v861, 1
      %v914 = vrot.slane %v862, 1
      %v915 = vsel %vm617, %v913, %v914
      %v916 = vrot.slane %v863, 1
      %v917 = vsel %vm617, %v914, %v916
      %v918 = vrot.slane %v864, 1
      %v919 = vrot.slane %v865, 1
      %v920 = vsel %vm617, %v918, %v919
      %v921 = vrot.slane %v866, 1
      %v922 = vsel %vm617, %v919, %v921
      %v923 = vrot.slane %v867, 1
      %v924 = vrot.slane %v868, 1
      %v925 = vsel %vm617, %v923, %v924
      %v926 = vrot.slane %v869, 1
      %v927 = vsel %vm617, %v924, %v926
      %v928 = vrot.slane %v870, 1
      %v929 = vrot.slane %v871, 1
      %v930 = vsel %vm617, %v928, %v929
      %v931 = vrot.slane %v872, 1
      %v932 = vsel %vm617, %v929, %v931
      %v933 = vrot.slane %v873, 1
      %v934 = vrot.slane %v874, 1
      %v935 = vsel %vm617, %v933, %v934
      %v936 = vrot.slane %v875, 1
      %v937 = vsel %vm617, %v934, %v936
      %v938 = vrot.slane %v876, 1
      %v939 = vrot.slane %v877, 1
      %v940 = vsel %vm617, %v938, %v939
      %v941 = vrot.slane %v878, 1
      %v942 = vsel %vm617, %v939, %v941
      %v959 = vadd.f32 %v835, %v905
      %v960 = vadd.f32 %v836, %v907
      %v961 = vadd.f32 %v837, %v910
      %v962 = vadd.f32 %v838, %v912
      %v963 = vadd.f32 %v839, %v915
      %v964 = vadd.f32 %v840, %v917
      %v965 = vadd.f32 %v841, %v920
      %v966 = vadd.f32 %v842, %v922
      %v967 = vadd.f32 %v843, %v925
      %v968 = vadd.f32 %v844, %v927
      %v969 = vadd.f32 %v845, %v930
      %v970 = vadd.f32 %v846, %v932
      %v971 = vadd.f32 %v847, %v935
      %v972 = vadd.f32 %v848, %v937
      %v973 = vadd.f32 %v849, %v940
      %v974 = vadd.f32 %v850, %v942
      %v975 = vlaneseq
      %v976 = vshrl.u32 %v975, 7
      %v977 = vsub.s32 2, %v976
      %v978 = vrot.slane %v527, %v977
      %v979 = vmul.f32 %v499, %v978
      %v980 = vmul.f32 %v500, %v978
      %v981 = vmul.f32 %v501, %v978
      %v982 = vmul.f32 %v502, %v978
      %v983 = vmul.f32 %v503, %v978
      %v984 = vmul.f32 %v504, %v978
      %v985 = vmul.f32 %v505, %v978
      %v986 = vmul.f32 %v506, %v978
      %v987 = vmul.f32 %v507, %v978
      %v988 = vmul.f32 %v508, %v978
      %v989 = vmul.f32 %v509, %v978
      %v990 = vmul.f32 %v510, %v978
      %v991 = vmul.f32 %v511, %v978
      %v992 = vmul.f32 %v512, %v978
      %v993 = vmul.f32 %v513, %v978
      %v994 = vmul.f32 %v514, %v978
      %v995 = vmul.f32 %v515, %v978
      %v996 = vmul.f32 %v516, %v978
      %v997 = vmul.f32 %v517, %v978
      %v998 = vmul.f32 %v518, %v978
      %v999 = vmul.f32 %v519, %v978
      %v1000 = vmul.f32 %v520, %v978
      %v1001 = vmul.f32 %v521, %v978
      %v1002 = vmul.f32 %v522, %v978
      %v1027 = vrot.slane %v979, 2
      %v1028 = vrot.slane %v980, 2
      %v1029 = vsel %vm742, %v1027, %v1028
      %v1030 = vrot.slane %v981, 2
      %v1031 = vsel %vm742, %v1028, %v1030
      %v1032 = vrot.slane %v982, 2
      %v1033 = vrot.slane %v983, 2
      %v1034 = vsel %vm742, %v1032, %v1033
      %v1035 = vrot.slane %v984, 2
      %v1036 = vsel %vm742, %v1033, %v1035
      %v1037 = vrot.slane %v985, 2
      %v1038 = vrot.slane %v986, 2
      %v1039 = vsel %vm742, %v1037, %v1038
      %v1040 = vrot.slane %v987, 2
      %v1041 = vsel %vm742, %v1038, %v1040
      %v1042 = vrot.slane %v988, 2
      %v1043 = vrot.slane %v989, 2
      %v1044 = vsel %vm742, %v1042, %v1043
      %v1045 = vrot.slane %v990, 2
      %v1046 = vsel %vm742, %v1043, %v1045
      %v1047 = vrot.slane %v991, 2
      %v1048 = vrot.slane %v992, 2
      %v1049 = vsel %vm742, %v1047, %v1048
      %v1050 = vrot.slane %v993, 2
      %v1051 = vsel %vm742, %v1048, %v1050
      %v1052 = vrot.slane %v994, 2
      %v1053 = vrot.slane %v995, 2
      %v1054 = vsel %vm742, %v1052, %v1053
      %v1055 = vrot.slane %v996, 2
      %v1056 = vsel %vm742, %v1053, %v1055
      %v1057 = vrot.slane %v997, 2
      %v1058 = vrot.slane %v998, 2
      %v1059 = vsel %vm742, %v1057, %v1058
      %v1060 = vrot.slane %v999, 2
      %v1061 = vsel %vm742, %v1058, %v1060
      %v1062 = vrot.slane %v1000, 2
      %v1063 = vrot.slane %v1001, 2
      %v1064 = vsel %vm742, %v1062, %v1063
      %v1065 = vrot.slane %v1002, 2
      %v1066 = vsel %vm742, %v1063, %v1065
      %v1083 = vadd.f32 %v959, %v1029
      %v1084 = vadd.f32 %v960, %v1031
      %v1085 = vadd.f32 %v961, %v1034
      %v1086 = vadd.f32 %v962, %v1036
      %v1087 = vadd.f32 %v963, %v1039
      %v1088 = vadd.f32 %v964, %v1041
      %v1089 = vadd.f32 %v965, %v1044
      %v1090 = vadd.f32 %v966, %v1046
      %v1091 = vadd.f32 %v967, %v1049
      %v1092 = vadd.f32 %v968, %v1051
      %v1093 = vadd.f32 %v969, %v1054
      %v1094 = vadd.f32 %v970, %v1056
      %v1095 = vadd.f32 %v971, %v1059
      %v1096 = vadd.f32 %v972, %v1061
      %v1097 = vadd.f32 %v973, %v1064
      %v1098 = vadd.f32 %v974, %v1066
      %v1099 = vlaneseq
      %v1100 = vshrl.u32 %v1099, 7
      %v1101 = vsub.s32 0, %v1100
      %v1102 = vrot.slane %v528, %v1101
      %v1103 = vmul.f32 %v502, %v1102
      %v1104 = vmul.f32 %v503, %v1102
      %v1105 = vmul.f32 %v505, %v1102
      %v1106 = vmul.f32 %v506, %v1102
      %v1107 = vmul.f32 %v508, %v1102
      %v1108 = vmul.f32 %v509, %v1102
      %v1109 = vmul.f32 %v511, %v1102
      %v1110 = vmul.f32 %v512, %v1102
      %v1111 = vmul.f32 %v514, %v1102
      %v1112 = vmul.f32 %v515, %v1102
      %v1113 = vmul.f32 %v517, %v1102
      %v1114 = vmul.f32 %v518, %v1102
      %v1115 = vmul.f32 %v520, %v1102
      %v1116 = vmul.f32 %v521, %v1102
      %v1117 = vmul.f32 %v523, %v1102
      %v1118 = vmul.f32 %v524, %v1102
      %v1119 = vadd.f32 %v1083, %v1103
      %v1120 = vadd.f32 %v1084, %v1104
      %v1121 = vadd.f32 %v1085, %v1105
      %v1122 = vadd.f32 %v1086, %v1106
      %v1123 = vadd.f32 %v1087, %v1107
      %v1124 = vadd.f32 %v1088, %v1108
      %v1125 = vadd.f32 %v1089, %v1109
      %v1126 = vadd.f32 %v1090, %v1110
      %v1127 = vadd.f32 %v1091, %v1111
      %v1128 = vadd.f32 %v1092, %v1112
      %v1129 = vadd.f32 %v1093, %v1113
      %v1130 = vadd.f32 %v1094, %v1114
      %v1131 = vadd.f32 %v1095, %v1115
      %v1132 = vadd.f32 %v1096, %v1116
      %v1133 = vadd.f32 %v1097, %v1117
      %v1134 = vadd.f32 %v1098, %v1118
      %v1135 = vlaneseq
      %v1136 = vshrl.u32 %v1135, 7
      %v1137 = vsub.s32 1, %v1136
      %v1138 = vrot.slane %v528, %v1137
      %v1139 = vmul.f32 %v502, %v1138
      %v1140 = vmul.f32 %v503, %v1138
      %v1141 = vmul.f32 %v504, %v1138
      %v1142 = vmul.f32 %v505, %v1138
      %v1143 = vmul.f32 %v506, %v1138
      %v1144 = vmul.f32 %v507, %v1138
      %v1145 = vmul.f32 %v508, %v1138
      %v1146 = vmul.f32 %v509, %v1138
      %v1147 = vmul.f32 %v510, %v1138
      %v1148 = vmul.f32 %v511, %v1138
      %v1149 = vmul.f32 %v512, %v1138
      %v1150 = vmul.f32 %v513, %v1138
      %v1151 = vmul.f32 %v514, %v1138
      %v1152 = vmul.f32 %v515, %v1138
      %v1153 = vmul.f32 %v516, %v1138
      %v1154 = vmul.f32 %v517, %v1138
      %v1155 = vmul.f32 %v518, %v1138
      %v1156 = vmul.f32 %v519, %v1138
      %v1157 = vmul.f32 %v520, %v1138
      %v1158 = vmul.f32 %v521, %v1138
      %v1159 = vmul.f32 %v522, %v1138
      %v1160 = vmul.f32 %v523, %v1138
      %v1161 = vmul.f32 %v524, %v1138
      %v1162 = vmul.f32 %v525, %v1138
      %v1187 = vrot.slane %v1139, 1
      %v1188 = vrot.slane %v1140, 1
      %v1189 = vsel %vm617, %v1187, %v1188
      %v1190 = vrot.slane %v1141, 1
      %v1191 = vsel %vm617, %v1188, %v1190
      %v1192 = vrot.slane %v1142, 1
      %v1193 = vrot.slane %v1143, 1
      %v1194 = vsel %vm617, %v1192, %v1193
      %v1195 = vrot.slane %v1144, 1
      %v1196 = vsel %vm617, %v1193, %v1195
      %v1197 = vrot.slane %v1145, 1
      %v1198 = vrot.slane %v1146, 1
      %v1199 = vsel %vm617, %v1197, %v1198
      %v1200 = vrot.slane %v1147, 1
      %v1201 = vsel %vm617, %v1198, %v1200
      %v1202 = vrot.slane %v1148, 1
      %v1203 = vrot.slane %v1149, 1
      %v1204 = vsel %vm617, %v1202, %v1203
      %v1205 = vrot.slane %v1150, 1
      %v1206 = vsel %vm617, %v1203, %v1205
      %v1207 = vrot.slane %v1151, 1
      %v1208 = vrot.slane %v1152, 1
      %v1209 = vsel %vm617, %v1207, %v1208
      %v1210 = vrot.slane %v1153, 1
      %v1211 = vsel %vm617, %v1208, %v1210
      %v1212 = vrot.slane %v1154, 1
      %v1213 = vrot.slane %v1155, 1
      %v1214 = vsel %vm617, %v1212, %v1213
      %v1215 = vrot.slane %v1156, 1
      %v1216 = vsel %vm617, %v1213, %v1215
      %v1217 = vrot.slane %v1157, 1
      %v1218 = vrot.slane %v1158, 1
      %v1219 = vsel %vm617, %v1217, %v1218
      %v1220 = vrot.slane %v1159, 1
      %v1221 = vsel %vm617, %v1218, %v1220
      %v1222 = vrot.slane %v1160, 1
      %v1223 = vrot.slane %v1161, 1
      %v1224 = vsel %vm617, %v1222, %v1223
      %v1225 = vrot.slane %v1162, 1
      %v1226 = vsel %vm617, %v1223, %v1225
      %v1243 = vadd.f32 %v1119, %v1189
      %v1244 = vadd.f32 %v1120, %v1191
      %v1245 = vadd.f32 %v1121, %v1194
      %v1246 = vadd.f32 %v1122, %v1196
      %v1247 = vadd.f32 %v1123, %v1199
      %v1248 = vadd.f32 %v1124, %v1201
      %v1249 = vadd.f32 %v1125, %v1204
      %v1250 = vadd.f32 %v1126, %v1206
      %v1251 = vadd.f32 %v1127, %v1209
      %v1252 = vadd.f32 %v1128, %v1211
      %v1253 = vadd.f32 %v1129, %v1214
      %v1254 = vadd.f32 %v1130, %v1216
      %v1255 = vadd.f32 %v1131, %v1219
      %v1256 = vadd.f32 %v1132, %v1221
      %v1257 = vadd.f32 %v1133, %v1224
      %v1258 = vadd.f32 %v1134, %v1226
      %v1259 = vlaneseq
      %v1260 = vshrl.u32 %v1259, 7
      %v1261 = vsub.s32 2, %v1260
      %v1262 = vrot.slane %v528, %v1261
      %v1263 = vmul.f32 %v502, %v1262
      %v1264 = vmul.f32 %v503, %v1262
      %v1265 = vmul.f32 %v504, %v1262
      %v1266 = vmul.f32 %v505, %v1262
      %v1267 = vmul.f32 %v506, %v1262
      %v1268 = vmul.f32 %v507, %v1262
      %v1269 = vmul.f32 %v508, %v1262
      %v1270 = vmul.f32 %v509, %v1262
      %v1271 = vmul.f32 %v510, %v1262
      %v1272 = vmul.f32 %v511, %v1262
      %v1273 = vmul.f32 %v512, %v1262
      %v1274 = vmul.f32 %v513, %v1262
      %v1275 = vmul.f32 %v514, %v1262
      %v1276 = vmul.f32 %v515, %v1262
      %v1277 = vmul.f32 %v516, %v1262
      %v1278 = vmul.f32 %v517, %v1262
      %v1279 = vmul.f32 %v518, %v1262
      %v1280 = vmul.f32 %v519, %v1262
      %v1281 = vmul.f32 %v520, %v1262
      %v1282 = vmul.f32 %v521, %v1262
      %v1283 = vmul.f32 %v522, %v1262
      %v1284 = vmul.f32 %v523, %v1262
      %v1285 = vmul.f32 %v524, %v1262
      %v1286 = vmul.f32 %v525, %v1262
      %v1311 = vrot.slane %v1263, 2
      %v1312 = vrot.slane %v1264, 2
      %v1313 = vsel %vm742, %v1311, %v1312
      %v1314 = vrot.slane %v1265, 2
      %v1315 = vsel %vm742, %v1312, %v1314
      %v1316 = vrot.slane %v1266, 2
      %v1317 = vrot.slane %v1267, 2
      %v1318 = vsel %vm742, %v1316, %v1317
      %v1319 = vrot.slane %v1268, 2
      %v1320 = vsel %vm742, %v1317, %v1319
      %v1321 = vrot.slane %v1269, 2
      %v1322 = vrot.slane %v1270, 2
      %v1323 = vsel %vm742, %v1321, %v1322
      %v1324 = vrot.slane %v1271, 2
      %v1325 = vsel %vm742, %v1322, %v1324
      %v1326 = vrot.slane %v1272, 2
      %v1327 = vrot.slane %v1273, 2
      %v1328 = vsel %vm742, %v1326, %v1327
      %v1329 = vrot.slane %v1274, 2
      %v1330 = vsel %vm742, %v1327, %v1329
      %v1331 = vrot.slane %v1275, 2
      %v1332 = vrot.slane %v1276, 2
      %v1333 = vsel %vm742, %v1331, %v1332
      %v1334 = vrot.slane %v1277, 2
      %v1335 = vsel %vm742, %v1332, %v1334
      %v1336 = vrot.slane %v1278, 2
      %v1337 = vrot.slane %v1279, 2
      %v1338 = vsel %vm742, %v1336, %v1337
      %v1339 = vrot.slane %v1280, 2
      %v1340 = vsel %vm742, %v1337, %v1339
      %v1341 = vrot.slane %v1281, 2
      %v1342 = vrot.slane %v1282, 2
      %v1343 = vsel %vm742, %v1341, %v1342
      %v1344 = vrot.slane %v1283, 2
      %v1345 = vsel %vm742, %v1342, %v1344
      %v1346 = vrot.slane %v1284, 2
      %v1347 = vrot.slane %v1285, 2
      %v1348 = vsel %vm742, %v1346, %v1347
      %v1349 = vrot.slane %v1286, 2
      %v1350 = vsel %vm742, %v1347, %v1349
      %v1367 = vadd.f32 %v1243, %v1313
      %v1368 = vadd.f32 %v1244, %v1315
      %v1369 = vadd.f32 %v1245, %v1318
      %v1370 = vadd.f32 %v1246, %v1320
      %v1371 = vadd.f32 %v1247, %v1323
      %v1372 = vadd.f32 %v1248, %v1325
      %v1373 = vadd.f32 %v1249, %v1328
      %v1374 = vadd.f32 %v1250, %v1330
      %v1375 = vadd.f32 %v1251, %v1333
      %v1376 = vadd.f32 %v1252, %v1335
      %v1377 = vadd.f32 %v1253, %v1338
      %v1378 = vadd.f32 %v1254, %v1340
      %v1379 = vadd.f32 %v1255, %v1343
      %v1380 = vadd.f32 %v1256, %v1345
      %v1381 = vadd.f32 %v1257, %v1348
      %v1382 = vadd.f32 %v1258, %v1350
      %v1383 = vld [vmem:[%s4] sm:$0xf]
      %v1384 = vld [vmem:[%s5] sm:$0x1]
      %v1386 = vlaneseq
      %v1387 = vshrl.u32 %v1386, 7
      %v1388 = vsub.s32 0, %v1387
      %v1389 = vrot.slane %v1384, %v1388
      %v1392 = vsel %vm458, %v1367, 0
      %v1395 = vsel %vm458, %v1368, 0
      %v1398 = vsel %vm458, %v1369, 0
      %v1401 = vsel %vm458, %v1370, 0
      %v1404 = vsel %vm458, %v1371, 0
      %v1407 = vsel %vm458, %v1372, 0
      %v1410 = vsel %vm458, %v1373, 0
      %v1413 = vsel %vm458, %v1374, 0
      %v1416 = vsel %vm458, %v1375, 0
      %v1419 = vsel %vm458, %v1376, 0
      %v1422 = vsel %vm458, %v1377, 0
      %v1425 = vsel %vm458, %v1378, 0
      %v1428 = vsel %vm458, %v1379, 0
      %v1431 = vsel %vm458, %v1380, 0
      %v1434 = vsel %vm458, %v1381, 0
      %v1437 = vsel %vm458, %v1382, 0
      %vm1439 = vcmask 1043456
      %v1441 = vsel %vm1439, %v1383, 0
      %1443 = vmatprep.subr.mxu0 0.0
      %1444 = vmatpush1.msra.mxu0 0.0
      %1445 = vmatprep.subr.mxu0 0.0
      %1446 = vmatpush1.msra.mxu0 0.0
      %1447 = vmatprep.subr.mxu0 0.0
      %1448 = vmatpush1.msra.mxu0 0.0
      %1449 = vmatprep.subr.mxu0 0.0
      %1450 = vmatpush1.msra.mxu0 0.0
      %1451 = vmatprep.subr.mxu0 0.0
      %1452 = vmatpush1.msra.mxu0 0.0
      %1453 = vmatprep.subr.mxu0 0.0
      %1454 = vmatpush1.msra.mxu0 0.0
      %1455 = vmatprep.subr.mxu0 0.0
      %1456 = vmatpush1.msra.mxu0 0.0
      %1457 = vmatprep.subr.mxu0 0.0
      %1458 = vmatpush1.msra.mxu0 0.0
      %1459 = vmatprep.subr.mxu0 0.0
      %1460 = vmatpush1.msra.mxu0 0.0
      %1461 = vmatprep.subr.mxu0 0.0
      %1462 = vmatpush1.msra.mxu0 0.0
      %1463 = vmatprep.subr.mxu0 0.0
      %1464 = vmatpush1.msra.mxu0 0.0
      %1465 = vmatprep.subr.mxu0 0.0
      %1466 = vmatpush1.msra.mxu0 0.0
      %1467 = vmatprep.subr.mxu0 0.0
      %1468 = vmatpush1.msra.mxu0 0.0
      %1469 = vmatprep.subr.mxu0 0.0
      %1470 = vmatpush1.msra.mxu0 0.0
      %1471 = vmatprep.subr.mxu0 0.0
      %1472 = vmatpush1.msra.mxu0 0.0
      %1473 = vmatprep.subr.mxu0 0.0
      %1474 = vmatpush1.msra.mxu0 %v1441
      %1475 = vmatprep.subr.mxu0 0.0
      %1476 = vmatpush2.msra.mxu0 0.0
      %1477 = vmatprep.subr.mxu0 0.0
      %1478 = vmatpush2.msra.mxu0 0.0
      %1479 = vmatprep.subr.mxu0 0.0
      %1480 = vmatpush2.msra.mxu0 0.0
      %1481 = vmatprep.subr.mxu0 0.0
      %1482 = vmatpush2.msra.mxu0 0.0
      %1483 = vmatprep.subr.mxu0 0.0
      %1484 = vmatpush2.msra.mxu0 0.0
      %1485 = vmatprep.subr.mxu0 0.0
      %1486 = vmatpush2.msra.mxu0 0.0
      %1487 = vmatprep.subr.mxu0 0.0
      %1488 = vmatpush2.msra.mxu0 0.0
      %1489 = vmatprep.subr.mxu0 0.0
      %1490 = vmatpush2.msra.mxu0 0.0
      %1491 = vmatprep.subr.mxu0 0.0
      %1492 = vmatpush2.msra.mxu0 0.0
      %1493 = vmatprep.subr.mxu0 0.0
      %1494 = vmatpush2.msra.mxu0 0.0
      %1495 = vmatprep.subr.mxu0 0.0
      %1496 = vmatpush2.msra.mxu0 0.0
      %1497 = vmatprep.subr.mxu0 0.0
      %1498 = vmatpush2.msra.mxu0 0.0
      %1499 = vmatprep.subr.mxu0 0.0
      %1500 = vmatpush2.msra.mxu0 0.0
      %1501 = vmatprep.subr.mxu0 0.0
      %1502 = vmatpush2.msra.mxu0 0.0
      %1503 = vmatprep.subr.mxu0 0.0
      %1504 = vmatpush2.msra.mxu0 0.0
      %1505 = vmatprep.subr.mxu0 0.0
      %1506 = vmatpush2.msra.mxu0 0.0
      %1507 = vmatprep.mubr.f32.mxu0 0.0
      %1508 = vmatmul.mubr.f32.gmra.mxu0 %v1392
      %v1509 = vpop.f32.mrf.mxu0
      %v1510 = vadd.f32 %v1389, %v1509
      %v1511 = vpop.f32.mrf.mxu0
      %1512 = vmatprep.mubr.f32.mxu0 0.0
      %1513 = vmatmul.mubr.f32.gmra.mxu0 %v1395
      %v1514 = vpop.f32.mrf.mxu0
      %v1515 = vadd.f32 %v1389, %v1514
      %v1516 = vpop.f32.mrf.mxu0
      %1517 = vmatprep.mubr.f32.mxu0 0.0
      %1518 = vmatmul.mubr.f32.gmra.mxu0 %v1398
      %v1519 = vpop.f32.mrf.mxu0
      %v1520 = vadd.f32 %v1389, %v1519
      %v1521 = vpop.f32.mrf.mxu0
      %1522 = vmatprep.mubr.f32.mxu0 0.0
      %1523 = vmatmul.mubr.f32.gmra.mxu0 %v1401
      %v1524 = vpop.f32.mrf.mxu0
      %v1525 = vadd.f32 %v1389, %v1524
      %v1526 = vpop.f32.mrf.mxu0
      %1527 = vmatprep.mubr.f32.mxu0 0.0
      %1528 = vmatmul.mubr.f32.gmra.mxu0 %v1404
      %v1529 = vpop.f32.mrf.mxu0
      %v1530 = vadd.f32 %v1389, %v1529
      %v1531 = vpop.f32.mrf.mxu0
      %1532 = vmatprep.mubr.f32.mxu0 0.0
      %1533 = vmatmul.mubr.f32.gmra.mxu0 %v1407
      %v1534 = vpop.f32.mrf.mxu0
      %v1535 = vadd.f32 %v1389, %v1534
      %v1536 = vpop.f32.mrf.mxu0
      %1537 = vmatprep.mubr.f32.mxu0 0.0
      %1538 = vmatmul.mubr.f32.gmra.mxu0 %v1410
      %v1539 = vpop.f32.mrf.mxu0
      %v1540 = vadd.f32 %v1389, %v1539
      %v1541 = vpop.f32.mrf.mxu0
      %1542 = vmatprep.mubr.f32.mxu0 0.0
      %1543 = vmatmul.mubr.f32.gmra.mxu0 %v1413
      %v1544 = vpop.f32.mrf.mxu0
      %v1545 = vadd.f32 %v1389, %v1544
      %v1546 = vpop.f32.mrf.mxu0
      %1547 = vmatprep.mubr.f32.mxu0 0.0
      %1548 = vmatmul.mubr.f32.gmra.mxu0 %v1416
      %v1549 = vpop.f32.mrf.mxu0
      %v1550 = vadd.f32 %v1389, %v1549
      %v1551 = vpop.f32.mrf.mxu0
      %1552 = vmatprep.mubr.f32.mxu0 0.0
      %1553 = vmatmul.mubr.f32.gmra.mxu0 %v1419
      %v1554 = vpop.f32.mrf.mxu0
      %v1555 = vadd.f32 %v1389, %v1554
      %v1556 = vpop.f32.mrf.mxu0
      %1557 = vmatprep.mubr.f32.mxu0 0.0
      %1558 = vmatmul.mubr.f32.gmra.mxu0 %v1422
      %v1559 = vpop.f32.mrf.mxu0
      %v1560 = vadd.f32 %v1389, %v1559
      %v1561 = vpop.f32.mrf.mxu0
      %1562 = vmatprep.mubr.f32.mxu0 0.0
      %1563 = vmatmul.mubr.f32.gmra.mxu0 %v1425
      %v1564 = vpop.f32.mrf.mxu0
      %v1565 = vadd.f32 %v1389, %v1564
      %v1566 = vpop.f32.mrf.mxu0
      %1567 = vmatprep.mubr.f32.mxu0 0.0
      %1568 = vmatmul.mubr.f32.gmra.mxu0 %v1428
      %v1569 = vpop.f32.mrf.mxu0
      %v1570 = vadd.f32 %v1389, %v1569
      %v1571 = vpop.f32.mrf.mxu0
      %1572 = vmatprep.mubr.f32.mxu0 0.0
      %1573 = vmatmul.mubr.f32.gmra.mxu0 %v1431
      %v1574 = vpop.f32.mrf.mxu0
      %v1575 = vadd.f32 %v1389, %v1574
      %v1576 = vpop.f32.mrf.mxu0
      %1577 = vmatprep.mubr.f32.mxu0 0.0
      %1578 = vmatmul.mubr.f32.gmra.mxu0 %v1434
      %v1579 = vpop.f32.mrf.mxu0
      %v1580 = vadd.f32 %v1389, %v1579
      %v1581 = vpop.f32.mrf.mxu0
      %1582 = vmatprep.mubr.f32.mxu0 0.0
      %1583 = vmatmul.mubr.f32.gmra.mxu0 %v1437
      %v1584 = vpop.f32.mrf.mxu0
      %v1585 = vadd.f32 %v1389, %v1584
      %v1586 = vpop.f32.mrf.mxu0
      %1587 = vdwg.mxu0
      %vm1588 = vcmask 64512
      %1589 = vst.msk [vmem:[%s418] sm:$0xff] %vm1588, %v1510
      %1590 = vst.msk [vmem:[%s418 + $0x8] sm:$0xff] %vm1588, %v1515
      %1591 = vst.msk [vmem:[%s418 + $0x10] sm:$0xff] %vm1588, %v1520
      %1592 = vst.msk [vmem:[%s418 + $0x18] sm:$0xff] %vm1588, %v1525
      %1593 = vst.msk [vmem:[%s418 + $0x20] sm:$0xff] %vm1588, %v1530
      %1594 = vst.msk [vmem:[%s418 + $0x28] sm:$0xff] %vm1588, %v1535
      %1595 = vst.msk [vmem:[%s418 + $0x30] sm:$0xff] %vm1588, %v1540
      %1596 = vst.msk [vmem:[%s418 + $0x38] sm:$0xff] %vm1588, %v1545
      %1597 = vst.msk [vmem:[%s418 + $0x40] sm:$0xff] %vm1588, %v1550
      %1598 = vst.msk [vmem:[%s418 + $0x48] sm:$0xff] %vm1588, %v1555
      %1599 = vst.msk [vmem:[%s418 + $0x50] sm:$0xff] %vm1588, %v1560
      %1600 = vst.msk [vmem:[%s418 + $0x58] sm:$0xff] %vm1588, %v1565
      %1601 = vst.msk [vmem:[%s418 + $0x60] sm:$0xff] %vm1588, %v1570
      %1602 = vst.msk [vmem:[%s418 + $0x68] sm:$0xff] %vm1588, %v1575
      %1603 = vst.msk [vmem:[%s418 + $0x70] sm:$0xff] %vm1588, %v1580
      %1604 = vst.msk [vmem:[%s418 + $0x78] sm:$0xff] %vm1588, %v1585
      %s1605 = smul.u32 8, %s22
      %p1606 = scmp.lt.s32.totalorder %s21, 1
      %s1607 = scalar_select %p1606, %s21, 1
      %p1608 = scmp.lt.s32.totalorder %s1605, 15
      %s1609 = scalar_select %p1608, %s1605, 15
      %s1610 = smul.addr %s1609, 2
      %s1611 = smul.addr %s1607, 32
      %s1612 = sadd.s32 %s1610, %s1611
      %s1613 = smul.addr %s1612, 8
      %s1614 = scalar_lea.vmem %s6, %s1613
      // Predicated region
      $region53: #{separable_conv.1} parent=43 // pred_check
        %p1615 = pneg %p212
      $region54: #{separable_conv.1} parent=43 // pred_check_branch
        %1617 = sbr.rel (%p1615) target = $region56
      $region55: #{separable_conv.1} parent=43 // pred_region
        %s1618 = smul.u32 8, %s22
      $region56: #{separable_conv.1} parent=43 // pred_fallthru
        _
    $region44: #{separable_conv.1} parent=5 // pred_fallthru
      _
    %p1619 = scmp.le.s32.totalorder 2, %s12
    // Predicated region
    $region57: #{separable_conv.1} parent=5 // pred_check
      %p1620 = pneg %p1619
    $region58: #{separable_conv.1} parent=5 // pred_check_branch
      %1622 = sbr.rel (%p1620) target = $region60
    $region59: #{separable_conv.1} parent=5 // pred_region
      %s1623 = ssub.s32 %s12, 2
      // Predicated region
      $region61: #{separable_conv.1} parent=59 // pred_check
        %p1624 = pneg %p218
      $region62: #{separable_conv.1} parent=59 // pred_check_branch
        %1626 = sbr.rel (%p1624) target = $region64
      $region63: #{separable_conv.1} parent=59 // pred_region
        %s1627 = smul.u32 8, %s24
        %p1628 = scmp.lt.s32.totalorder %s23, 1
        %s1629 = scalar_select %p1628, %s23, 1
        %p1630 = scmp.lt.s32.totalorder %s1627, 15
        %s1631 = scalar_select %p1630, %s1627, 15
        %s1632 = smul.addr %s1631, 2
        %s1633 = smul.addr %s1629, 32
        %s1634 = sadd.s32 %s1632, %s1633
        %s1635 = smul.addr %s1634, 8
        %s1636 = scalar_lea.vmem %s6, %s1635
      $region64: #{separable_conv.1} parent=59 // pred_fallthru
        _
    $region60: #{separable_conv.1} parent=5 // pred_fallthru
      _
  $region6: #{separable_conv.1} parent=0 // loop_footer
    %s16 = sadd.s32 1, %s12
  $region7: #{separable_conv.1} parent=0 // loop_footer_branch
    %11 = sbr.rel target = $region3
  $region8: #{separable_conv.1} parent=0 // loop_exit
    _

</llo_original>
